<compile_context>
chip_gen: v6e
topology: v6e:2x2x1
jax: 0.10.0
libtpu: 0.0.40
codegen_flags: <defaults>
</compile_context>

<pallas_src>
import functools
import math

import numpy as np
import jax
import jax.numpy as jnp
from jax.experimental import pallas as pl
from jax.experimental.pallas import tpu as pltpu

D_MODEL = 32      # d_model
NUM_CHAR = 98     # vocabulary size (module default)
MAXLEN = 25       # positional table length (module constant)
LN_EPS = 1e-5     # torch.nn.LayerNorm default eps


def _round_up(x, m):
    return -(-x // m) * m


def _embedding_ln_kernel(tok_ref, thi_ref, tlo_ref, p_ref, ids_ref,
                         gamma_ref, beta_ref, out_ref, *,
                         n_groups, vpad, inv_d):
    """One grid step: gather + positional add + LayerNorm for a tile of rows.

    tok_ref : (r, n_groups) int32   per row: tpr letter ids + 1 position-period id
    thi/tlo : (n_groups*vpad, 128)  bf16 hi/lo halves of the blocked gather table
    p_ref   : (128, 128) bf16       block-diagonal 0/1 LayerNorm reduction matrix
    ids_ref : (1, vpad) int32       0..vpad-1 id row for the one-hot compares
    """
    f32 = jnp.float32
    bf16 = jnp.bfloat16

    tok = tok_ref[...]                     # (r, n_groups) int32
    ids = ids_ref[...]                     # (1, vpad) int32

    # ---- gather letter rows + positional rows via per-group one-hot matmuls.
    # Each group builds one (r, vpad) 0/1 one-hot (exact integer compare, exact
    # in bf16) and matmuls it against its (vpad, 128) table slice; the hi/lo
    # bf16 split of the f32 table keeps gathered values exact to ~2^-18 while
    # every matmul stays a single MXU pass.  Ids outside [0, vpad) (and the
    # padding range [V, vpad)) silently select the zero row, unlike torch which
    # would raise on out-of-range indices.
    emb = None
    for g in range(n_groups):
        oh = (tok[:, g:g + 1] == ids).astype(f32).astype(bf16)   # (r, vpad) 0/1
        hi = thi_ref[pl.ds(g * vpad, vpad), :]                   # (vpad, 128) bf16
        lo = tlo_ref[pl.ds(g * vpad, vpad), :]
        contrib = (jnp.dot(oh, hi, preferred_element_type=f32) +
                   jnp.dot(oh, lo, preferred_element_type=f32))  # (r, 128) f32
        emb = contrib if emb is None else emb + contrib

    # ---- per-token LayerNorm over each d_model-lane group (lane-dense).
    # Segment mean / variance via a single block-diagonal 0/1 matrix on the
    # MXU (full 128-lane width, no narrow padded matmuls); two-pass variance.
    p = p_ref[...]                                               # (128, 128) bf16
    e_hi = emb.astype(bf16)
    e_lo = (emb - e_hi.astype(f32)).astype(bf16)
    mean = (jnp.dot(e_hi, p, preferred_element_type=f32) +
            jnp.dot(e_lo, p, preferred_element_type=f32)) * inv_d
    cent = emb - mean
    c2 = cent * cent
    c2_hi = c2.astype(bf16)
    c2_lo = (c2 - c2_hi.astype(f32)).astype(bf16)
    var = (jnp.dot(c2_hi, p, preferred_element_type=f32) +
           jnp.dot(c2_lo, p, preferred_element_type=f32)) * inv_d
    inv_std = jax.lax.rsqrt(var + LN_EPS)                        # EUP slot

    # gamma/beta are (1, 128) resident rows; broadcast along sublanes.
    out_ref[...] = cent * inv_std * gamma_ref[...] + beta_ref[...]
    # Dropout is identity in eval mode.
    # TODO(synk): training-mode dropout (pltpu.prng_*) not implemented.
    # TODO(synk): optional bf16 output for the write-bandwidth-bound v5e case
    #             (needs a consumer dtype contract).


def embedding_forward(tokens, letter_table, pos_table, gamma, beta, *,
                      target_tokens=8192,
                      vmem_limit_bytes=32 * 1024 * 1024):
    """Pallas implementation of Embedding.forward (eval mode)."""
    B, S = tokens.shape
    V, D = letter_table.shape
    if S > pos_table.shape[0]:
        raise ValueError("sequence length exceeds positional table length")

    if 128 % D == 0:
        lanes = 128
    elif D % 128 == 0:
        lanes = D
    else:
        # TODO(synk): d_model that neither divides nor is a multiple of 128.
        raise NotImplementedError("d_model must divide or be a multiple of 128")
    tpr = lanes // D                          # tokens per 128-lane output row
    n_groups = tpr + 1                        # +1 group for the positional rows
    vpad = max(128, _round_up(V, 128))        # one-hot width per group
    period_rows = math.lcm(S, tpr) // tpr     # positional pattern period in rows

    n_tok = B * S
    rows_needed = -(-n_tok // tpr)

    # --- tile selection: big tiles amortize the ~0.35us/step overhead; keep
    # the grid >= 2 steps when there is enough work so the "parallel" axis can
    # be sharded across both TensorCores of a v7x chip.  The (r_tile, 5) int32
    # id block pads to 128 lanes in VMEM (~= output-tile size), which is
    # included in the ~15 MiB/step budget below.
    rows_cap = max(8, ((1 << 20) // (lanes * 4)) // 8 * 8)   # ~1 MiB f32 out block
    target_rows = max(8, (min(target_tokens // tpr, rows_cap) // 8) * 8)
    if rows_needed <= target_rows:
        if rows_needed >= 1024:               # enough work -> split for 2-TC chips
            r_tile = _round_up(-(-rows_needed // 2), 8)
            num_tiles = 2
        else:
            r_tile = _round_up(rows_needed, 8)
            num_tiles = 1
    else:
        r_tile = target_rows
        num_tiles = -(-rows_needed // r_tile)
    r_total = num_tiles * r_tile

    # --- token ids in flat (b*S+s) order; last column = positional period id.
    tok_flat = jnp.zeros((r_total * tpr,), jnp.int32).at[:n_tok].set(
        tokens.reshape(-1).astype(jnp.int32))
    tok_ids = tok_flat.reshape(r_total, tpr)
    row_period = (jnp.arange(r_total, dtype=jnp.int32) % period_rows)[:, None]
    tok_aug = jnp.concatenate([tok_ids, row_period], axis=1)    # (r_total, n_groups)

    # --- gather table: groups 0..tpr-1 hold the letter table in their lane
    # block; group tpr holds the per-period positional rows (pos folded into
    # the same gather -> no output-sized positional slab).  Split into bf16
    # hi/lo halves so the matmuls stay single-pass yet ~f32 exact.
    letter_np = np.asarray(letter_table, np.float32)
    pos_np = np.asarray(pos_table, np.float32)[:S]
    table = np.zeros((n_groups * vpad, lanes), np.float32)
    for g in range(tpr):
        table[g * vpad:g * vpad + V, g * D:(g + 1) * D] = letter_np
    for j in range(period_rows):
        for g in range(tpr):
            table[tpr * vpad + j, g * D:(g + 1) * D] = pos_np[(j * tpr + g) % S]
    table = jnp.asarray(table)
    table_hi = table.astype(jnp.bfloat16)
    table_lo = (table - table_hi.astype(jnp.float32)).astype(jnp.bfloat16)

    # --- host-built constants (nothing is rebuilt per grid step in-kernel).
    lane_idx = np.arange(lanes)
    p_ones = (lane_idx[:, None] // D == lane_idx[None, :] // D)
    p_ones = jnp.asarray(p_ones.astype(np.float32)).astype(jnp.bfloat16)
    ids_row = jnp.arange(vpad, dtype=jnp.int32).reshape(1, vpad)
    gamma_row = jnp.tile(gamma.astype(jnp.float32).reshape(-1), tpr).reshape(1, lanes)
    beta_row = jnp.tile(beta.astype(jnp.float32).reshape(-1), tpr).reshape(1, lanes)

    kernel = functools.partial(_embedding_ln_kernel,
                               n_groups=n_groups, vpad=vpad, inv_d=1.0 / D)

    out = pl.pallas_call(
        kernel,
        out_shape=jax.ShapeDtypeStruct((r_total, lanes), jnp.float32),
        grid_spec=pltpu.PrefetchScalarGridSpec(
            num_scalar_prefetch=0,
            grid=(num_tiles,),
            in_specs=[
                pl.BlockSpec((r_tile, n_groups), lambda i: (i, 0)),        # token ids
                pl.BlockSpec((n_groups * vpad, lanes), lambda i: (0, 0)),  # table hi (resident)
                pl.BlockSpec((n_groups * vpad, lanes), lambda i: (0, 0)),  # table lo (resident)
                pl.BlockSpec((lanes, lanes), lambda i: (0, 0)),            # LN 0/1 matrix
                pl.BlockSpec((1, vpad), lambda i: (0, 0)),                 # one-hot id row
                pl.BlockSpec((1, lanes), lambda i: (0, 0)),                # LayerNorm gamma
                pl.BlockSpec((1, lanes), lambda i: (0, 0)),                # LayerNorm beta
            ],
            out_specs=pl.BlockSpec((r_tile, lanes), lambda i: (i, 0)),
        ),
        compiler_params=pltpu.CompilerParams(
            dimension_semantics=("parallel",),
            vmem_limit_bytes=vmem_limit_bytes),
    )(tok_aug, table_hi, table_lo, p_ones, ids_row, gamma_row, beta_row)

    # Lane-dense (rows, 128) slab -> (B, S, D); pure layout plumbing.
    return out.reshape(r_total * tpr, D)[:n_tok].reshape(B, S, D)


def _make_pos_table(maxlen, e):
    # Identical to the torch construction in __init__ (sinusoidal PE).
    i = np.arange(e, dtype=np.float64)
    pos = np.arange(maxlen, dtype=np.float64)[:, None]
    angle = pos / np.power(10000.0, (i - i % 2) / e)[None, :]
    tbl = angle.copy()
    tbl[:, 0::2] = np.sin(angle[:, 0::2])
    tbl[:, 1::2] = np.cos(angle[:, 1::2])
    return jnp.asarray(tbl, dtype=jnp.float32)


def _reference(tokens, letter_table, pos_table, gamma, beta):
    B, S = tokens.shape
    e = letter_table[tokens] + pos_table[jnp.arange(S)][None, :, :]
    mean = jnp.mean(e, axis=-1, keepdims=True)
    var = jnp.mean((e - mean) ** 2, axis=-1, keepdims=True)
    return (e - mean) / jnp.sqrt(var + LN_EPS) * gamma + beta


if __name__ == "__main__":
    key = jax.random.PRNGKey(0)
    k_tok, k_emb, k_tok2 = jax.random.split(key, 3)

    B, S = 2, 8   # small example shapes (seq_len <= maxlen)
    tokens = jax.random.randint(k_tok, (B, S), 0, NUM_CHAR, dtype=jnp.int32)

    # nn.Embedding default init: N(0, 1)
    letter_table = jax.random.normal(k_emb, (NUM_CHAR, D_MODEL), dtype=jnp.float32)
    pos_table = _make_pos_table(MAXLEN, D_MODEL)
    # nn.LayerNorm default affine init
    gamma = jnp.ones((D_MODEL,), dtype=jnp.float32)
    beta = jnp.zeros((D_MODEL,), dtype=jnp.float32)

    out = embedding_forward(tokens, letter_table, pos_table, gamma, beta)
    out = jax.block_until_ready(out)

    ref = _reference(tokens, letter_table, pos_table, gamma, beta)
    assert out.shape == (B, S, D_MODEL)
    assert jnp.allclose(out, ref, atol=2e-4, rtol=2e-4), "mismatch vs reference"

    # Additional check of the multi-tile ("parallel" grid) path.
    B2 = 512
    tokens2 = jax.random.randint(k_tok2, (B2, S), 0, NUM_CHAR, dtype=jnp.int32)
    out2 = jax.block_until_ready(
        embedding_forward(tokens2, letter_table, pos_table, gamma, beta))
    ref2 = _reference(tokens2, letter_table, pos_table, gamma, beta)
    assert out2.shape == (B2, S, D_MODEL)
    assert jnp.allclose(out2, ref2, atol=2e-4, rtol=2e-4), "mismatch (tiled path)"

    print("KERNEL_OK")
</pallas_src>

<mosaic_0001>
module attributes {stable_mosaic.version = 11 : i64} {
  func.func @_embedding_ln_kernel(%arg0: i32, %arg1: memref<8x5xi32, #tpu.memory_space<vmem>>, %arg2: memref<640x128xbf16, #tpu.memory_space<vmem>>, %arg3: memref<640x128xbf16, #tpu.memory_space<vmem>>, %arg4: memref<128x128xbf16, #tpu.memory_space<vmem>>, %arg5: memref<1x128xi32, #tpu.memory_space<vmem>>, %arg6: memref<1x128xf32, #tpu.memory_space<vmem>>, %arg7: memref<1x128xf32, #tpu.memory_space<vmem>>, %arg8: memref<8x128xf32, #tpu.memory_space<vmem>>) attributes {dimension_semantics = [#tpu.dimension_semantics<parallel>], iteration_bounds = array<i64: 1>, scalar_prefetch = 0 : i64, scratch_operands = 0 : i64, tpu.core_type = #tpu.core_type<tc>, window_params = [{transform_indices = @transform_0, window_bounds = array<i64: 8, 5>}, {pipeline_mode = #tpu.pipeline_mode<synchronous>, transform_indices = @transform_1, window_bounds = array<i64: 640, 128>}, {pipeline_mode = #tpu.pipeline_mode<synchronous>, transform_indices = @transform_2, window_bounds = array<i64: 640, 128>}, {pipeline_mode = #tpu.pipeline_mode<synchronous>, transform_indices = @transform_3, window_bounds = array<i64: 128, 128>}, {pipeline_mode = #tpu.pipeline_mode<synchronous>, transform_indices = @transform_4, window_bounds = array<i64: 1, 128>}, {pipeline_mode = #tpu.pipeline_mode<synchronous>, transform_indices = @transform_5, window_bounds = array<i64: 1, 128>}, {pipeline_mode = #tpu.pipeline_mode<synchronous>, transform_indices = @transform_6, window_bounds = array<i64: 1, 128>}, {transform_indices = @transform_7, window_bounds = array<i64: 8, 128>}]} {
    %c0 = arith.constant 0 : index
    %c0_0 = arith.constant 0 : index
    %0 = vector.load %arg1[%c0, %c0_0] : memref<8x5xi32, #tpu.memory_space<vmem>>, vector<8x5xi32>
    %c0_1 = arith.constant 0 : index
    %c0_2 = arith.constant 0 : index
    %1 = vector.load %arg5[%c0_1, %c0_2] : memref<1x128xi32, #tpu.memory_space<vmem>>, vector<1x128xi32>
    %2 = vector.extract_strided_slice %0 {offsets = [0, 0], sizes = [8, 1], strides = [1, 1]} : vector<8x5xi32> to vector<8x1xi32>
    %3 = vector.broadcast %2 : vector<8x1xi32> to vector<8x128xi32>
    %4 = vector.broadcast %1 : vector<1x128xi32> to vector<8x128xi32>
    %5 = arith.cmpi eq, %3, %4 : vector<8x128xi32>
    %6 = arith.extui %5 : vector<8x128xi1> to vector<8x128xi32>
    %7 = arith.sitofp %6 : vector<8x128xi32> to vector<8x128xf32>
    %8 = arith.truncf %7 : vector<8x128xf32> to vector<8x128xbf16>
    %c0_3 = arith.constant 0 : index
    %c0_4 = arith.constant 0 : index
    %9 = vector.load %arg2[%c0_3, %c0_4] : memref<640x128xbf16, #tpu.memory_space<vmem>>, vector<128x128xbf16>
    %c0_5 = arith.constant 0 : index
    %c0_6 = arith.constant 0 : index
    %10 = vector.load %arg3[%c0_5, %c0_6] : memref<640x128xbf16, #tpu.memory_space<vmem>>, vector<128x128xbf16>
    %cst = arith.constant dense<0.000000e+00> : vector<8x128xf32>
    %11 = tpu.matmul %8, %9, %cst {dimension_numbers = #tpu.dot_dimension_numbers<[1], [0], [0], [1], [0, 0, 1, 1], [], []>} : vector<8x128xbf16>, vector<128x128xbf16>, vector<8x128xf32> -> vector<8x128xf32>
    %cst_7 = arith.constant dense<0.000000e+00> : vector<8x128xf32>
    %12 = tpu.matmul %8, %10, %cst_7 {dimension_numbers = #tpu.dot_dimension_numbers<[1], [0], [0], [1], [0, 0, 1, 1], [], []>} : vector<8x128xbf16>, vector<128x128xbf16>, vector<8x128xf32> -> vector<8x128xf32>
    %13 = arith.addf %11, %12 : vector<8x128xf32>
    %14 = vector.extract_strided_slice %0 {offsets = [0, 1], sizes = [8, 1], strides = [1, 1]} : vector<8x5xi32> to vector<8x1xi32>
    %15 = vector.broadcast %14 : vector<8x1xi32> to vector<8x128xi32>
    %16 = vector.broadcast %1 : vector<1x128xi32> to vector<8x128xi32>
    %17 = arith.cmpi eq, %15, %16 : vector<8x128xi32>
    %18 = arith.extui %17 : vector<8x128xi1> to vector<8x128xi32>
    %19 = arith.sitofp %18 : vector<8x128xi32> to vector<8x128xf32>
    %20 = arith.truncf %19 : vector<8x128xf32> to vector<8x128xbf16>
    %c128 = arith.constant 128 : index
    %c0_8 = arith.constant 0 : index
    %21 = vector.load %arg2[%c128, %c0_8] : memref<640x128xbf16, #tpu.memory_space<vmem>>, vector<128x128xbf16>
    %c128_9 = arith.constant 128 : index
    %c0_10 = arith.constant 0 : index
    %22 = vector.load %arg3[%c128_9, %c0_10] : memref<640x128xbf16, #tpu.memory_space<vmem>>, vector<128x128xbf16>
    %cst_11 = arith.constant dense<0.000000e+00> : vector<8x128xf32>
    %23 = tpu.matmul %20, %21, %cst_11 {dimension_numbers = #tpu.dot_dimension_numbers<[1], [0], [0], [1], [0, 0, 1, 1], [], []>} : vector<8x128xbf16>, vector<128x128xbf16>, vector<8x128xf32> -> vector<8x128xf32>
    %cst_12 = arith.constant dense<0.000000e+00> : vector<8x128xf32>
    %24 = tpu.matmul %20, %22, %cst_12 {dimension_numbers = #tpu.dot_dimension_numbers<[1], [0], [0], [1], [0, 0, 1, 1], [], []>} : vector<8x128xbf16>, vector<128x128xbf16>, vector<8x128xf32> -> vector<8x128xf32>
    %25 = arith.addf %23, %24 : vector<8x128xf32>
    %26 = arith.addf %13, %25 : vector<8x128xf32>
    %27 = vector.extract_strided_slice %0 {offsets = [0, 2], sizes = [8, 1], strides = [1, 1]} : vector<8x5xi32> to vector<8x1xi32>
    %28 = vector.broadcast %27 : vector<8x1xi32> to vector<8x128xi32>
    %29 = vector.broadcast %1 : vector<1x128xi32> to vector<8x128xi32>
    %30 = arith.cmpi eq, %28, %29 : vector<8x128xi32>
    %31 = arith.extui %30 : vector<8x128xi1> to vector<8x128xi32>
    %32 = arith.sitofp %31 : vector<8x128xi32> to vector<8x128xf32>
    %33 = arith.truncf %32 : vector<8x128xf32> to vector<8x128xbf16>
    %c256 = arith.constant 256 : index
    %c0_13 = arith.constant 0 : index
    %34 = vector.load %arg2[%c256, %c0_13] : memref<640x128xbf16, #tpu.memory_space<vmem>>, vector<128x128xbf16>
    %c256_14 = arith.constant 256 : index
    %c0_15 = arith.constant 0 : index
    %35 = vector.load %arg3[%c256_14, %c0_15] : memref<640x128xbf16, #tpu.memory_space<vmem>>, vector<128x128xbf16>
    %cst_16 = arith.constant dense<0.000000e+00> : vector<8x128xf32>
    %36 = tpu.matmul %33, %34, %cst_16 {dimension_numbers = #tpu.dot_dimension_numbers<[1], [0], [0], [1], [0, 0, 1, 1], [], []>} : vector<8x128xbf16>, vector<128x128xbf16>, vector<8x128xf32> -> vector<8x128xf32>
    %cst_17 = arith.constant dense<0.000000e+00> : vector<8x128xf32>
    %37 = tpu.matmul %33, %35, %cst_17 {dimension_numbers = #tpu.dot_dimension_numbers<[1], [0], [0], [1], [0, 0, 1, 1], [], []>} : vector<8x128xbf16>, vector<128x128xbf16>, vector<8x128xf32> -> vector<8x128xf32>
    %38 = arith.addf %36, %37 : vector<8x128xf32>
    %39 = arith.addf %26, %38 : vector<8x128xf32>
    %40 = vector.extract_strided_slice %0 {offsets = [0, 3], sizes = [8, 1], strides = [1, 1]} : vector<8x5xi32> to vector<8x1xi32>
    %41 = vector.broadcast %40 : vector<8x1xi32> to vector<8x128xi32>
    %42 = vector.broadcast %1 : vector<1x128xi32> to vector<8x128xi32>
    %43 = arith.cmpi eq, %41, %42 : vector<8x128xi32>
    %44 = arith.extui %43 : vector<8x128xi1> to vector<8x128xi32>
    %45 = arith.sitofp %44 : vector<8x128xi32> to vector<8x128xf32>
    %46 = arith.truncf %45 : vector<8x128xf32> to vector<8x128xbf16>
    %c384 = arith.constant 384 : index
    %c0_18 = arith.constant 0 : index
    %47 = vector.load %arg2[%c384, %c0_18] : memref<640x128xbf16, #tpu.memory_space<vmem>>, vector<128x128xbf16>
    %c384_19 = arith.constant 384 : index
    %c0_20 = arith.constant 0 : index
    %48 = vector.load %arg3[%c384_19, %c0_20] : memref<640x128xbf16, #tpu.memory_space<vmem>>, vector<128x128xbf16>
    %cst_21 = arith.constant dense<0.000000e+00> : vector<8x128xf32>
    %49 = tpu.matmul %46, %47, %cst_21 {dimension_numbers = #tpu.dot_dimension_numbers<[1], [0], [0], [1], [0, 0, 1, 1], [], []>} : vector<8x128xbf16>, vector<128x128xbf16>, vector<8x128xf32> -> vector<8x128xf32>
    %cst_22 = arith.constant dense<0.000000e+00> : vector<8x128xf32>
    %50 = tpu.matmul %46, %48, %cst_22 {dimension_numbers = #tpu.dot_dimension_numbers<[1], [0], [0], [1], [0, 0, 1, 1], [], []>} : vector<8x128xbf16>, vector<128x128xbf16>, vector<8x128xf32> -> vector<8x128xf32>
    %51 = arith.addf %49, %50 : vector<8x128xf32>
    %52 = arith.addf %39, %51 : vector<8x128xf32>
    %53 = vector.extract_strided_slice %0 {offsets = [0, 4], sizes = [8, 1], strides = [1, 1]} : vector<8x5xi32> to vector<8x1xi32>
    %54 = vector.broadcast %53 : vector<8x1xi32> to vector<8x128xi32>
    %55 = vector.broadcast %1 : vector<1x128xi32> to vector<8x128xi32>
    %56 = arith.cmpi eq, %54, %55 : vector<8x128xi32>
    %57 = arith.extui %56 : vector<8x128xi1> to vector<8x128xi32>
    %58 = arith.sitofp %57 : vector<8x128xi32> to vector<8x128xf32>
    %59 = arith.truncf %58 : vector<8x128xf32> to vector<8x128xbf16>
    %c512 = arith.constant 512 : index
    %c0_23 = arith.constant 0 : index
    %60 = vector.load %arg2[%c512, %c0_23] : memref<640x128xbf16, #tpu.memory_space<vmem>>, vector<128x128xbf16>
    %c512_24 = arith.constant 512 : index
    %c0_25 = arith.constant 0 : index
    %61 = vector.load %arg3[%c512_24, %c0_25] : memref<640x128xbf16, #tpu.memory_space<vmem>>, vector<128x128xbf16>
    %cst_26 = arith.constant dense<0.000000e+00> : vector<8x128xf32>
    %62 = tpu.matmul %59, %60, %cst_26 {dimension_numbers = #tpu.dot_dimension_numbers<[1], [0], [0], [1], [0, 0, 1, 1], [], []>} : vector<8x128xbf16>, vector<128x128xbf16>, vector<8x128xf32> -> vector<8x128xf32>
    %cst_27 = arith.constant dense<0.000000e+00> : vector<8x128xf32>
    %63 = tpu.matmul %59, %61, %cst_27 {dimension_numbers = #tpu.dot_dimension_numbers<[1], [0], [0], [1], [0, 0, 1, 1], [], []>} : vector<8x128xbf16>, vector<128x128xbf16>, vector<8x128xf32> -> vector<8x128xf32>
    %64 = arith.addf %62, %63 : vector<8x128xf32>
    %65 = arith.addf %52, %64 : vector<8x128xf32>
    %c0_28 = arith.constant 0 : index
    %c0_29 = arith.constant 0 : index
    %66 = vector.load %arg4[%c0_28, %c0_29] : memref<128x128xbf16, #tpu.memory_space<vmem>>, vector<128x128xbf16>
    %67 = arith.truncf %65 : vector<8x128xf32> to vector<8x128xbf16>
    %68 = arith.extf %67 : vector<8x128xbf16> to vector<8x128xf32>
    %69 = arith.subf %65, %68 : vector<8x128xf32>
    %70 = arith.truncf %69 : vector<8x128xf32> to vector<8x128xbf16>
    %cst_30 = arith.constant dense<0.000000e+00> : vector<8x128xf32>
    %71 = tpu.matmul %67, %66, %cst_30 {dimension_numbers = #tpu.dot_dimension_numbers<[1], [0], [0], [1], [0, 0, 1, 1], [], []>} : vector<8x128xbf16>, vector<128x128xbf16>, vector<8x128xf32> -> vector<8x128xf32>
    %cst_31 = arith.constant dense<0.000000e+00> : vector<8x128xf32>
    %72 = tpu.matmul %70, %66, %cst_31 {dimension_numbers = #tpu.dot_dimension_numbers<[1], [0], [0], [1], [0, 0, 1, 1], [], []>} : vector<8x128xbf16>, vector<128x128xbf16>, vector<8x128xf32> -> vector<8x128xf32>
    %73 = arith.addf %71, %72 : vector<8x128xf32>
    %cst_32 = arith.constant 3.125000e-02 : f32
    %74 = vector.broadcast %cst_32 : f32 to vector<8x128xf32>
    %75 = arith.mulf %73, %74 : vector<8x128xf32>
    %76 = arith.subf %65, %75 : vector<8x128xf32>
    %77 = arith.mulf %76, %76 : vector<8x128xf32>
    %78 = arith.truncf %77 : vector<8x128xf32> to vector<8x128xbf16>
    %79 = arith.extf %78 : vector<8x128xbf16> to vector<8x128xf32>
    %80 = arith.subf %77, %79 : vector<8x128xf32>
    %81 = arith.truncf %80 : vector<8x128xf32> to vector<8x128xbf16>
    %cst_33 = arith.constant dense<0.000000e+00> : vector<8x128xf32>
    %82 = tpu.matmul %78, %66, %cst_33 {dimension_numbers = #tpu.dot_dimension_numbers<[1], [0], [0], [1], [0, 0, 1, 1], [], []>} : vector<8x128xbf16>, vector<128x128xbf16>, vector<8x128xf32> -> vector<8x128xf32>
    %cst_34 = arith.constant dense<0.000000e+00> : vector<8x128xf32>
    %83 = tpu.matmul %81, %66, %cst_34 {dimension_numbers = #tpu.dot_dimension_numbers<[1], [0], [0], [1], [0, 0, 1, 1], [], []>} : vector<8x128xbf16>, vector<128x128xbf16>, vector<8x128xf32> -> vector<8x128xf32>
    %84 = arith.addf %82, %83 : vector<8x128xf32>
    %cst_35 = arith.constant 3.125000e-02 : f32
    %85 = vector.broadcast %cst_35 : f32 to vector<8x128xf32>
    %86 = arith.mulf %84, %85 : vector<8x128xf32>
    %cst_36 = arith.constant 9.99999974E-6 : f32
    %87 = vector.broadcast %cst_36 : f32 to vector<8x128xf32>
    %88 = arith.addf %86, %87 : vector<8x128xf32>
    %89 = math.rsqrt %88 : vector<8x128xf32>
    %90 = arith.mulf %76, %89 : vector<8x128xf32>
    %c0_37 = arith.constant 0 : index
    %c0_38 = arith.constant 0 : index
    %91 = vector.load %arg6[%c0_37, %c0_38] : memref<1x128xf32, #tpu.memory_space<vmem>>, vector<1x128xf32>
    %92 = vector.broadcast %91 : vector<1x128xf32> to vector<8x128xf32>
    %93 = arith.mulf %90, %92 : vector<8x128xf32>
    %c0_39 = arith.constant 0 : index
    %c0_40 = arith.constant 0 : index
    %94 = vector.load %arg7[%c0_39, %c0_40] : memref<1x128xf32, #tpu.memory_space<vmem>>, vector<1x128xf32>
    %95 = vector.broadcast %94 : vector<1x128xf32> to vector<8x128xf32>
    %96 = arith.addf %93, %95 : vector<8x128xf32>
    %c0_41 = arith.constant 0 : index
    %c0_42 = arith.constant 0 : index
    %97 = vector.load %arg8[%c0_41, %c0_42] : memref<8x128xf32, #tpu.memory_space<vmem>>, vector<8x128xf32>
    tpu.vector_store %arg8[%c0_41, %c0_42], %96 {strides = array<i32>} : memref<8x128xf32, #tpu.memory_space<vmem>>, vector<8x128xf32>,
    return
  }
  func.func @transform_0(%arg0: i32) -> (i32, i32) {
    %c0_i32 = arith.constant 0 : i32
    %c0_i32_0 = arith.constant 0 : i32
    return %arg0, %c0_i32 : i32, i32
  }
  func.func @transform_1(%arg0: i32) -> (i32, i32) {
    %c0_i32 = arith.constant 0 : i32
    %c0_i32_0 = arith.constant 0 : i32
    %c0_i32_1 = arith.constant 0 : i32
    return %c0_i32, %c0_i32_0 : i32, i32
  }
  func.func @transform_2(%arg0: i32) -> (i32, i32) {
    %c0_i32 = arith.constant 0 : i32
    %c0_i32_0 = arith.constant 0 : i32
    %c0_i32_1 = arith.constant 0 : i32
    return %c0_i32, %c0_i32_0 : i32, i32
  }
  func.func @transform_3(%arg0: i32) -> (i32, i32) {
    %c0_i32 = arith.constant 0 : i32
    %c0_i32_0 = arith.constant 0 : i32
    %c0_i32_1 = arith.constant 0 : i32
    return %c0_i32, %c0_i32_0 : i32, i32
  }
  func.func @transform_4(%arg0: i32) -> (i32, i32) {
    %c0_i32 = arith.constant 0 : i32
    %c0_i32_0 = arith.constant 0 : i32
    %c0_i32_1 = arith.constant 0 : i32
    return %c0_i32, %c0_i32_0 : i32, i32
  }
  func.func @transform_5(%arg0: i32) -> (i32, i32) {
    %c0_i32 = arith.constant 0 : i32
    %c0_i32_0 = arith.constant 0 : i32
    %c0_i32_1 = arith.constant 0 : i32
    return %c0_i32, %c0_i32_0 : i32, i32
  }
  func.func @transform_6(%arg0: i32) -> (i32, i32) {
    %c0_i32 = arith.constant 0 : i32
    %c0_i32_0 = arith.constant 0 : i32
    %c0_i32_1 = arith.constant 0 : i32
    return %c0_i32, %c0_i32_0 : i32, i32
  }
  func.func @transform_7(%arg0: i32) -> (i32, i32) {
    %c0_i32 = arith.constant 0 : i32
    %c0_i32_0 = arith.constant 0 : i32
    return %arg0, %c0_i32 : i32, i32
  }
}

</mosaic_0001>

<llo_original>
// kernel: tpu_custom_call.1
$region0: #{tpu_custom_call.1}
  #allocation0 [shape = 'u32[]', space=smem, size = 0x4, offset = 0x4, fixed_abs, tag = 'smem constant byte address 0x4 - core index']
  #allocation1 [shape = 'u32[144,128]{1,0:T(1,128)}', space=vmem, size = 0x12000, scoped, tag = 'internal scratch']
  %s0 = inlined_call_operand.hbm [shape: s32[8,5], index: 0, kind: input, shape index: {}]
  %s1 = inlined_call_operand.hbm [shape: bf16[640,128], index: 1, kind: input, shape index: {}]
  %s2 = inlined_call_operand.hbm [shape: bf16[640,128], index: 2, kind: input, shape index: {}]
  %s3 = inlined_call_operand.hbm [shape: bf16[128,128], index: 3, kind: input, shape index: {}]
  %s4 = inlined_call_operand.vmem [shape: s32[1,128], index: 4, kind: input, shape index: {}]
  %s5 = inlined_call_operand.vmem [shape: f32[1,128], index: 5, kind: input, shape index: {}]
  %s6 = inlined_call_operand.vmem [shape: f32[1,128], index: 6, kind: input, shape index: {}]
  %s7 = inlined_call_operand.hbm [shape: f32[8,128], index: 7, kind: output, shape index: {}]
  %s8 = sld [smem:[#allocation0]]
  $region54: #{tpu_custom_call.1} parent=0
    _
  %s10 = ssub.s32 1, %s8
  %s11 = scalar_select 0, %s10, %s8
  $region1: #{tpu_custom_call.1} parent=0
    #allocation2 [shape = 'u8[4096]{0}', space=vmem, size = 0x1000, scoped, tag = 'input window, operand 0, single buffered']
    #allocation3 [shape = 's32[1]{0}', space=sflag, size = 0x4, scoped, tag = 'scoped memory for tpu_custom_call.1']
    #allocation4 [shape = 's32[1]{0}', space=sflag, size = 0x4, scoped, tag = 'scoped memory for tpu_custom_call.1']
    #allocation5 [shape = 'u8[163840]{0}', space=vmem, size = 0x28000, scoped, tag = 'input window, operand 1, single buffered']
    #allocation6 [shape = 's32[1]{0}', space=sflag, size = 0x4, scoped, tag = 'scoped memory for tpu_custom_call.1']
    #allocation7 [shape = 'u8[163840]{0}', space=vmem, size = 0x28000, scoped, tag = 'input window, operand 2, single buffered']
    #allocation8 [shape = 'u8[32768]{0}', space=vmem, size = 0x8000, scoped, tag = 'input window, operand 3, single buffered']
    #allocation9 [shape = 's32[1]{0}', space=sflag, size = 0x4, scoped, tag = 'scoped memory for tpu_custom_call.1']
    #allocation10 [shape = 'u8[4096]{0}', space=vmem, size = 0x1000, scoped, tag = 'output window, operand 0, single buffered']
    %12 = vsyncpa [#allocation3], 0
    %13 = vsyncpa [#allocation6], 0
    %14 = vsyncpa [#allocation9], 0
    %15 = vsyncpa [#allocation4], 0
    // Predicated region
    $region2: #{tpu_custom_call.1} parent=1 // pred_check
      _
    $region3: #{tpu_custom_call.1} parent=1 // pred_check_branch
      %17 = sbr.rel (0) target = $region5
    $region4: #{tpu_custom_call.1} parent=1 // pred_region
      %s19 = ssub.s32 128, 128
      %20 = vsyncadd [#allocation3], %s19
      %s22 = sshll.u32 [#allocation2], 4
      %s23 = int_to_ptr.vmem [resolvable:$true] %s22
      %25 = dma.hbm_to_vmem [thread:$0]  %s0, 128, %s23, [#allocation3]
    $region5: #{tpu_custom_call.1} parent=1 // pred_fallthru
      _
    // Predicated region
    $region6: #{tpu_custom_call.1} parent=1 // pred_check
      _
    $region7: #{tpu_custom_call.1} parent=1 // pred_check_branch
      %27 = sbr.rel (0) target = $region9
    $region8: #{tpu_custom_call.1} parent=1 // pred_region
      %s29 = ssub.s32 5120, 5120
      %30 = vsyncadd [#allocation6], %s29
      %s31 = sshll.u32 [#allocation5], 4
      %s32 = int_to_ptr.vmem [resolvable:$true] %s31
      %37 = dma.hbm_to_vmem [thread:$0]  %s1, 5120, %s32, [#allocation6], 64, 64, 4
    $region9: #{tpu_custom_call.1} parent=1 // pred_fallthru
      _
    // Predicated region
    $region10: #{tpu_custom_call.1} parent=1 // pred_check
      _
    $region11: #{tpu_custom_call.1} parent=1 // pred_check_branch
      %39 = sbr.rel (0) target = $region13
    $region12: #{tpu_custom_call.1} parent=1 // pred_region
      %s41 = ssub.s32 5120, 5120
      %42 = vsyncadd [#allocation6], %s41
      %s43 = sshll.u32 [#allocation7], 4
      %s44 = int_to_ptr.vmem [resolvable:$true] %s43
      %49 = dma.hbm_to_vmem [thread:$0]  %s2, 5120, %s44, [#allocation6], 64, 64, 4
    $region13: #{tpu_custom_call.1} parent=1 // pred_fallthru
      _
    // Predicated region
    $region14: #{tpu_custom_call.1} parent=1 // pred_check
      _
    $region15: #{tpu_custom_call.1} parent=1 // pred_check_branch
      %51 = sbr.rel (0) target = $region17
    $region16: #{tpu_custom_call.1} parent=1 // pred_region
      %s53 = ssub.s32 1024, 1024
      %54 = vsyncadd [#allocation9], %s53
      %s55 = sshll.u32 [#allocation8], 4
      %s56 = int_to_ptr.vmem [resolvable:$true] %s55
      %61 = dma.hbm_to_vmem [thread:$0]  %s3, 1024, %s56, [#allocation9], 64, 64, 4
    $region17: #{tpu_custom_call.1} parent=1 // pred_fallthru
      _
    // Predicated region
    $region18: #{tpu_custom_call.1} parent=1 // pred_check
      _
    $region19: #{tpu_custom_call.1} parent=1 // pred_check_branch
      %63 = sbr.rel (0) target = $region21
    $region20: #{tpu_custom_call.1} parent=1 // pred_region
      _
    $region21: #{tpu_custom_call.1} parent=1 // pred_fallthru
      _
    // Predicated region
    $region22: #{tpu_custom_call.1} parent=1 // pred_check
      _
    $region23: #{tpu_custom_call.1} parent=1 // pred_check_branch
      %65 = sbr.rel (0) target = $region25
    $region24: #{tpu_custom_call.1} parent=1 // pred_region
      _
    $region25: #{tpu_custom_call.1} parent=1 // pred_fallthru
      _
    // Predicated region
    $region26: #{tpu_custom_call.1} parent=1 // pred_check
      _
    $region27: #{tpu_custom_call.1} parent=1 // pred_check_branch
      %67 = sbr.rel (0) target = $region29
    $region28: #{tpu_custom_call.1} parent=1 // pred_region
      _
    $region29: #{tpu_custom_call.1} parent=1 // pred_fallthru
      _
    // Predicated region
    $region30: #{tpu_custom_call.1} parent=1 // pred_check
      _
    $region31: #{tpu_custom_call.1} parent=1 // pred_check_branch
      %69 = sbr.rel (0) target = $region33
    $region32: #{tpu_custom_call.1} parent=1 // pred_region
      %70 = dma.done [#allocation3], 128
    $region33: #{tpu_custom_call.1} parent=1 // pred_fallthru
      _
    // Predicated region
    $region34: #{tpu_custom_call.1} parent=1 // pred_check
      _
    $region35: #{tpu_custom_call.1} parent=1 // pred_check_branch
      %72 = sbr.rel (0) target = $region37
    $region36: #{tpu_custom_call.1} parent=1 // pred_region
      %73 = dma.done [#allocation6], 5120
    $region37: #{tpu_custom_call.1} parent=1 // pred_fallthru
      _
    // Predicated region
    $region38: #{tpu_custom_call.1} parent=1 // pred_check
      _
    $region39: #{tpu_custom_call.1} parent=1 // pred_check_branch
      %75 = sbr.rel (0) target = $region41
    $region40: #{tpu_custom_call.1} parent=1 // pred_region
      %76 = dma.done [#allocation6], 5120
    $region41: #{tpu_custom_call.1} parent=1 // pred_fallthru
      _
    // Predicated region
    $region42: #{tpu_custom_call.1} parent=1 // pred_check
      _
    $region43: #{tpu_custom_call.1} parent=1 // pred_check_branch
      %78 = sbr.rel (0) target = $region45
    $region44: #{tpu_custom_call.1} parent=1 // pred_region
      %79 = dma.done [#allocation9], 1024
    $region45: #{tpu_custom_call.1} parent=1 // pred_fallthru
      _
    %v81 = vld [vmem:[#allocation2] sm:$0xff]
    %v82 = vld [vmem:[%s4] sm:$0x1]
    %83 = vset.pattern.permute.xlu0 0
    %84 = vperm.xlu0 %83, %v81
    %v85 = vpop.permute.xlu0 %84
    %v86 = vlaneseq
    %v87 = vshrl.u32 %v86, 7
    %v88 = vsub.s32 0, %v87
    %v89 = vrot.slane %v82, %v88
    %vm90 = vcmp.eq.s32.totalorder %v85, %v89
    %v91 = vsel %vm90, 1, 0
    %v92 = vcvt.s32.f32 %v91
    %v93 = vpack.c.bf16 %v92, %v92
    %v94 = vld [vmem:[#allocation5] sm:$0xf]
    %v95 = vld [vmem:[#allocation5 + $0x4] sm:$0xf]
    %v96 = vld [vmem:[#allocation5 + $0x8] sm:$0xf]
    %v97 = vld [vmem:[#allocation5 + $0xc] sm:$0xf]
    %v98 = vld [vmem:[#allocation5 + $0x10] sm:$0xf]
    %v99 = vld [vmem:[#allocation5 + $0x14] sm:$0xf]
    %v100 = vld [vmem:[#allocation5 + $0x18] sm:$0xf]
    %v101 = vld [vmem:[#allocation5 + $0x1c] sm:$0xf]
    %v102 = vld [vmem:[#allocation5 + $0x20] sm:$0xf]
    %v103 = vld [vmem:[#allocation5 + $0x24] sm:$0xf]
    %v104 = vld [vmem:[#allocation5 + $0x28] sm:$0xf]
    %v105 = vld [vmem:[#allocation5 + $0x2c] sm:$0xf]
    %v106 = vld [vmem:[#allocation5 + $0x30] sm:$0xf]
    %v107 = vld [vmem:[#allocation5 + $0x34] sm:$0xf]
    %v108 = vld [vmem:[#allocation5 + $0x38] sm:$0xf]
    %v109 = vld [vmem:[#allocation5 + $0x3c] sm:$0xf]
    %v110 = vld [vmem:[#allocation7] sm:$0xf]
    %v111 = vld [vmem:[#allocation7 + $0x4] sm:$0xf]
    %v112 = vld [vmem:[#allocation7 + $0x8] sm:$0xf]
    %v113 = vld [vmem:[#allocation7 + $0xc] sm:$0xf]
    %v114 = vld [vmem:[#allocation7 + $0x10] sm:$0xf]
    %v115 = vld [vmem:[#allocation7 + $0x14] sm:$0xf]
    %v116 = vld [vmem:[#allocation7 + $0x18] sm:$0xf]
    %v117 = vld [vmem:[#allocation7 + $0x1c] sm:$0xf]
    %v118 = vld [vmem:[#allocation7 + $0x20] sm:$0xf]
    %v119 = vld [vmem:[#allocation7 + $0x24] sm:$0xf]
    %v120 = vld [vmem:[#allocation7 + $0x28] sm:$0xf]
    %v121 = vld [vmem:[#allocation7 + $0x2c] sm:$0xf]
    %v122 = vld [vmem:[#allocation7 + $0x30] sm:$0xf]
    %v123 = vld [vmem:[#allocation7 + $0x34] sm:$0xf]
    %v124 = vld [vmem:[#allocation7 + $0x38] sm:$0xf]
    %v125 = vld [vmem:[#allocation7 + $0x3c] sm:$0xf]
    %v142 = vunpack.c.l.b16 %v110
    %v143 = vunpack.c.l.b16 %v111
    %v144 = vunpack.c.l.b16 %v112
    %v145 = vunpack.c.l.b16 %v113
    %v146 = vunpack.c.l.b16 %v114
    %v147 = vunpack.c.l.b16 %v115
    %v148 = vunpack.c.l.b16 %v116
    %v149 = vunpack.c.l.b16 %v117
    %v150 = vunpack.c.l.b16 %v118
    %v151 = vunpack.c.l.b16 %v119
    %v152 = vunpack.c.l.b16 %v120
    %v153 = vunpack.c.l.b16 %v121
    %v154 = vunpack.c.l.b16 %v122
    %v155 = vunpack.c.l.b16 %v123
    %v156 = vunpack.c.l.b16 %v124
    %v157 = vunpack.c.l.b16 %v125
    %v158 = vpack.c.b16 %v143, %v142
    %v159 = vpack.c.b16 %v145, %v144
    %v160 = vpack.c.b16 %v147, %v146
    %v161 = vpack.c.b16 %v149, %v148
    %v162 = vpack.c.b16 %v151, %v150
    %v163 = vpack.c.b16 %v153, %v152
    %v164 = vpack.c.b16 %v155, %v154
    %v165 = vpack.c.b16 %v157, %v156
    %174 = vmatprep.subr.bf16.mxu0 0
    %175 = vmatpush1.bf16.msra.mxu0 %v165
    %176 = vmatprep.subr.bf16.mxu0 0
    %177 = vmatpush1.bf16.msra.mxu0 %v164
    %178 = vmatprep.subr.bf16.mxu0 0
    %179 = vmatpush1.bf16.msra.mxu0 %v163
    %180 = vmatprep.subr.bf16.mxu0 0
    %181 = vmatpush1.bf16.msra.mxu0 %v162
    %182 = vmatprep.subr.bf16.mxu0 0
    %183 = vmatpush1.bf16.msra.mxu0 %v161
    %184 = vmatprep.subr.bf16.mxu0 0
    %185 = vmatpush1.bf16.msra.mxu0 %v160
    %186 = vmatprep.subr.bf16.mxu0 0
    %187 = vmatpush1.bf16.msra.mxu0 %v159
    %188 = vmatprep.subr.bf16.mxu0 0
    %189 = vmatpush1.bf16.msra.mxu0 %v158
    %190 = vmatprep.subr.bf16.mxu0 0
    %191 = vmatpush2.bf16.msra.mxu0 0
    %192 = vmatprep.subr.bf16.mxu0 0
    %193 = vmatpush2.bf16.msra.mxu0 0
    %194 = vmatprep.subr.bf16.mxu0 0
    %195 = vmatpush2.bf16.msra.mxu0 0
    %196 = vmatprep.subr.bf16.mxu0 0
    %197 = vmatpush2.bf16.msra.mxu0 0
    %198 = vmatprep.subr.bf16.mxu0 0
    %199 = vmatpush2.bf16.msra.mxu0 0
    %200 = vmatprep.subr.bf16.mxu0 0
    %201 = vmatpush2.bf16.msra.mxu0 0
    %202 = vmatprep.subr.bf16.mxu0 0
    %203 = vmatpush2.bf16.msra.mxu0 0
    %204 = vmatprep.subr.bf16.mxu0 0
    %205 = vmatpush2.bf16.msra.mxu0 0
    %206 = vmatprep.mubr.bf16.mxu0 0
    %207 = vmatmul.mubr.bf16.gmra.mxu0 %v93
    %v208 = vpop.f32.mrf.mxu0
    %v209 = vadd.f32 0.0, %v208
    %v210 = vpop.f32.mrf.mxu0
    %v211 = vpop.f32.mrf.mxu0
    %v212 = vpop.f32.mrf.mxu0
    %213 = vdwg.mxu0
    %v230 = vunpack.c.l.b16 %v94
    %v231 = vunpack.c.l.b16 %v95
    %v232 = vunpack.c.l.b16 %v96
    %v233 = vunpack.c.l.b16 %v97
    %v234 = vunpack.c.l.b16 %v98
    %v235 = vunpack.c.l.b16 %v99
    %v236 = vunpack.c.l.b16 %v100
    %v237 = vunpack.c.l.b16 %v101
    %v238 = vunpack.c.l.b16 %v102
    %v239 = vunpack.c.l.b16 %v103
    %v240 = vunpack.c.l.b16 %v104
    %v241 = vunpack.c.l.b16 %v105
    %v242 = vunpack.c.l.b16 %v106
    %v243 = vunpack.c.l.b16 %v107
    %v244 = vunpack.c.l.b16 %v108
    %v245 = vunpack.c.l.b16 %v109
    %v246 = vpack.c.b16 %v231, %v230
    %v247 = vpack.c.b16 %v233, %v232
    %v248 = vpack.c.b16 %v235, %v234
    %v249 = vpack.c.b16 %v237, %v236
    %v250 = vpack.c.b16 %v239, %v238
    %v251 = vpack.c.b16 %v241, %v240
    %v252 = vpack.c.b16 %v243, %v242
    %v253 = vpack.c.b16 %v245, %v244
    %262 = vmatprep.subr.bf16.mxu0 0
    %263 = vmatpush1.bf16.msra.mxu0 %v253
    %264 = vmatprep.subr.bf16.mxu0 0
    %265 = vmatpush1.bf16.msra.mxu0 %v252
    %266 = vmatprep.subr.bf16.mxu0 0
    %267 = vmatpush1.bf16.msra.mxu0 %v251
    %268 = vmatprep.subr.bf16.mxu0 0
    %269 = vmatpush1.bf16.msra.mxu0 %v250
    %270 = vmatprep.subr.bf16.mxu0 0
    %271 = vmatpush1.bf16.msra.mxu0 %v249
    %272 = vmatprep.subr.bf16.mxu0 0
    %273 = vmatpush1.bf16.msra.mxu0 %v248
    %274 = vmatprep.subr.bf16.mxu0 0
    %275 = vmatpush1.bf16.msra.mxu0 %v247
    %276 = vmatprep.subr.bf16.mxu0 0
    %277 = vmatpush1.bf16.msra.mxu0 %v246
    %278 = vmatprep.subr.bf16.mxu0 0
    %279 = vmatpush2.bf16.msra.mxu0 0
    %280 = vmatprep.subr.bf16.mxu0 0
    %281 = vmatpush2.bf16.msra.mxu0 0
    %282 = vmatprep.subr.bf16.mxu0 0
    %283 = vmatpush2.bf16.msra.mxu0 0
    %284 = vmatprep.subr.bf16.mxu0 0
    %285 = vmatpush2.bf16.msra.mxu0 0
    %286 = vmatprep.subr.bf16.mxu0 0
    %287 = vmatpush2.bf16.msra.mxu0 0
    %288 = vmatprep.subr.bf16.mxu0 0
    %289 = vmatpush2.bf16.msra.mxu0 0
    %290 = vmatprep.subr.bf16.mxu0 0
    %291 = vmatpush2.bf16.msra.mxu0 0
    %292 = vmatprep.subr.bf16.mxu0 0
    %293 = vmatpush2.bf16.msra.mxu0 0
    %294 = vmatprep.mubr.bf16.mxu0 0
    %295 = vmatmul.mubr.bf16.gmra.mxu0 %v93
    %v296 = vpop.f32.mrf.mxu0
    %v297 = vadd.f32 %v209, %v296
    %v298 = vpop.f32.mrf.mxu0
    %v299 = vpop.f32.mrf.mxu0
    %v300 = vpop.f32.mrf.mxu0
    %301 = vdwg.mxu0
    %302 = vset.pattern.permute.xlu0 1
    %303 = vperm.xlu0 %302, %v81
    %v304 = vpop.permute.xlu0 %303
    %vm305 = vcmp.eq.s32.totalorder %v304, %v89
    %v306 = vsel %vm305, 1, 0
    %v307 = vcvt.s32.f32 %v306
    %v308 = vpack.c.bf16 %v307, %v307
    %v309 = vld [vmem:[#allocation5 + $0x40] sm:$0xf]
    %v310 = vld [vmem:[#allocation5 + $0x44] sm:$0xf]
    %v311 = vld [vmem:[#allocation5 + $0x48] sm:$0xf]
    %v312 = vld [vmem:[#allocation5 + $0x4c] sm:$0xf]
    %v313 = vld [vmem:[#allocation5 + $0x50] sm:$0xf]
    %v314 = vld [vmem:[#allocation5 + $0x54] sm:$0xf]
    %v315 = vld [vmem:[#allocation5 + $0x58] sm:$0xf]
    %v316 = vld [vmem:[#allocation5 + $0x5c] sm:$0xf]
    %v317 = vld [vmem:[#allocation5 + $0x60] sm:$0xf]
    %v318 = vld [vmem:[#allocation5 + $0x64] sm:$0xf]
    %v319 = vld [vmem:[#allocation5 + $0x68] sm:$0xf]
    %v320 = vld [vmem:[#allocation5 + $0x6c] sm:$0xf]
    %v321 = vld [vmem:[#allocation5 + $0x70] sm:$0xf]
    %v322 = vld [vmem:[#allocation5 + $0x74] sm:$0xf]
    %v323 = vld [vmem:[#allocation5 + $0x78] sm:$0xf]
    %v324 = vld [vmem:[#allocation5 + $0x7c] sm:$0xf]
    %v325 = vld [vmem:[#allocation7 + $0x40] sm:$0xf]
    %v326 = vld [vmem:[#allocation7 + $0x44] sm:$0xf]
    %v327 = vld [vmem:[#allocation7 + $0x48] sm:$0xf]
    %v328 = vld [vmem:[#allocation7 + $0x4c] sm:$0xf]
    %v329 = vld [vmem:[#allocation7 + $0x50] sm:$0xf]
    %v330 = vld [vmem:[#allocation7 + $0x54] sm:$0xf]
    %v331 = vld [vmem:[#allocation7 + $0x58] sm:$0xf]
    %v332 = vld [vmem:[#allocation7 + $0x5c] sm:$0xf]
    %v333 = vld [vmem:[#allocation7 + $0x60] sm:$0xf]
    %v334 = vld [vmem:[#allocation7 + $0x64] sm:$0xf]
    %v335 = vld [vmem:[#allocation7 + $0x68] sm:$0xf]
    %v336 = vld [vmem:[#allocation7 + $0x6c] sm:$0xf]
    %v337 = vld [vmem:[#allocation7 + $0x70] sm:$0xf]
    %v338 = vld [vmem:[#allocation7 + $0x74] sm:$0xf]
    %v339 = vld [vmem:[#allocation7 + $0x78] sm:$0xf]
    %v340 = vld [vmem:[#allocation7 + $0x7c] sm:$0xf]
    %v357 = vunpack.c.l.b16 %v325
    %v358 = vunpack.c.l.b16 %v326
    %v359 = vunpack.c.l.b16 %v327
    %v360 = vunpack.c.l.b16 %v328
    %v361 = vunpack.c.l.b16 %v329
    %v362 = vunpack.c.l.b16 %v330
    %v363 = vunpack.c.l.b16 %v331
    %v364 = vunpack.c.l.b16 %v332
    %v365 = vunpack.c.l.b16 %v333
    %v366 = vunpack.c.l.b16 %v334
    %v367 = vunpack.c.l.b16 %v335
    %v368 = vunpack.c.l.b16 %v336
    %v369 = vunpack.c.l.b16 %v337
    %v370 = vunpack.c.l.b16 %v338
    %v371 = vunpack.c.l.b16 %v339
    %v372 = vunpack.c.l.b16 %v340
    %v373 = vpack.c.b16 %v358, %v357
    %v374 = vpack.c.b16 %v360, %v359
    %v375 = vpack.c.b16 %v362, %v361
    %v376 = vpack.c.b16 %v364, %v363
    %v377 = vpack.c.b16 %v366, %v365
    %v378 = vpack.c.b16 %v368, %v367
    %v379 = vpack.c.b16 %v370, %v369
    %v380 = vpack.c.b16 %v372, %v371
    %389 = vmatprep.subr.bf16.mxu0 0
    %390 = vmatpush1.bf16.msra.mxu0 %v380
    %391 = vmatprep.subr.bf16.mxu0 0
    %392 = vmatpush1.bf16.msra.mxu0 %v379
    %393 = vmatprep.subr.bf16.mxu0 0
    %394 = vmatpush1.bf16.msra.mxu0 %v378
    %395 = vmatprep.subr.bf16.mxu0 0
    %396 = vmatpush1.bf16.msra.mxu0 %v377
    %397 = vmatprep.subr.bf16.mxu0 0
    %398 = vmatpush1.bf16.msra.mxu0 %v376
    %399 = vmatprep.subr.bf16.mxu0 0
    %400 = vmatpush1.bf16.msra.mxu0 %v375
    %401 = vmatprep.subr.bf16.mxu0 0
    %402 = vmatpush1.bf16.msra.mxu0 %v374
    %403 = vmatprep.subr.bf16.mxu0 0
    %404 = vmatpush1.bf16.msra.mxu0 %v373
    %405 = vmatprep.subr.bf16.mxu0 0
    %406 = vmatpush2.bf16.msra.mxu0 0
    %407 = vmatprep.subr.bf16.mxu0 0
    %408 = vmatpush2.bf16.msra.mxu0 0
    %409 = vmatprep.subr.bf16.mxu0 0
    %410 = vmatpush2.bf16.msra.mxu0 0
    %411 = vmatprep.subr.bf16.mxu0 0
    %412 = vmatpush2.bf16.msra.mxu0 0
    %413 = vmatprep.subr.bf16.mxu0 0
    %414 = vmatpush2.bf16.msra.mxu0 0
    %415 = vmatprep.subr.bf16.mxu0 0
    %416 = vmatpush2.bf16.msra.mxu0 0
    %417 = vmatprep.subr.bf16.mxu0 0
    %418 = vmatpush2.bf16.msra.mxu0 0
    %419 = vmatprep.subr.bf16.mxu0 0
    %420 = vmatpush2.bf16.msra.mxu0 0
    %421 = vmatprep.mubr.bf16.mxu0 0
    %422 = vmatmul.mubr.bf16.gmra.mxu0 %v308
    %v423 = vpop.f32.mrf.mxu0
    %v424 = vadd.f32 0.0, %v423
    %v425 = vpop.f32.mrf.mxu0
    %v426 = vpop.f32.mrf.mxu0
    %v427 = vpop.f32.mrf.mxu0
    %428 = vdwg.mxu0
    %v445 = vunpack.c.l.b16 %v309
    %v446 = vunpack.c.l.b16 %v310
    %v447 = vunpack.c.l.b16 %v311
    %v448 = vunpack.c.l.b16 %v312
    %v449 = vunpack.c.l.b16 %v313
    %v450 = vunpack.c.l.b16 %v314
    %v451 = vunpack.c.l.b16 %v315
    %v452 = vunpack.c.l.b16 %v316
    %v453 = vunpack.c.l.b16 %v317
    %v454 = vunpack.c.l.b16 %v318
    %v455 = vunpack.c.l.b16 %v319
    %v456 = vunpack.c.l.b16 %v320
    %v457 = vunpack.c.l.b16 %v321
    %v458 = vunpack.c.l.b16 %v322
    %v459 = vunpack.c.l.b16 %v323
    %v460 = vunpack.c.l.b16 %v324
    %v461 = vpack.c.b16 %v446, %v445
    %v462 = vpack.c.b16 %v448, %v447
    %v463 = vpack.c.b16 %v450, %v449
    %v464 = vpack.c.b16 %v452, %v451
    %v465 = vpack.c.b16 %v454, %v453
    %v466 = vpack.c.b16 %v456, %v455
    %v467 = vpack.c.b16 %v458, %v457
    %v468 = vpack.c.b16 %v460, %v459
    %477 = vmatprep.subr.bf16.mxu0 0
    %478 = vmatpush1.bf16.msra.mxu0 %v468
    %479 = vmatprep.subr.bf16.mxu0 0
    %480 = vmatpush1.bf16.msra.mxu0 %v467
    %481 = vmatprep.subr.bf16.mxu0 0
    %482 = vmatpush1.bf16.msra.mxu0 %v466
    %483 = vmatprep.subr.bf16.mxu0 0
    %484 = vmatpush1.bf16.msra.mxu0 %v465
    %485 = vmatprep.subr.bf16.mxu0 0
    %486 = vmatpush1.bf16.msra.mxu0 %v464
    %487 = vmatprep.subr.bf16.mxu0 0
    %488 = vmatpush1.bf16.msra.mxu0 %v463
    %489 = vmatprep.subr.bf16.mxu0 0
    %490 = vmatpush1.bf16.msra.mxu0 %v462
    %491 = vmatprep.subr.bf16.mxu0 0
    %492 = vmatpush1.bf16.msra.mxu0 %v461
    %493 = vmatprep.subr.bf16.mxu0 0
    %494 = vmatpush2.bf16.msra.mxu0 0
    %495 = vmatprep.subr.bf16.mxu0 0
    %496 = vmatpush2.bf16.msra.mxu0 0
    %497 = vmatprep.subr.bf16.mxu0 0
    %498 = vmatpush2.bf16.msra.mxu0 0
    %499 = vmatprep.subr.bf16.mxu0 0
    %500 = vmatpush2.bf16.msra.mxu0 0
    %501 = vmatprep.subr.bf16.mxu0 0
    %502 = vmatpush2.bf16.msra.mxu0 0
    %503 = vmatprep.subr.bf16.mxu0 0
    %504 = vmatpush2.bf16.msra.mxu0 0
    %505 = vmatprep.subr.bf16.mxu0 0
    %506 = vmatpush2.bf16.msra.mxu0 0
    %507 = vmatprep.subr.bf16.mxu0 0
    %508 = vmatpush2.bf16.msra.mxu0 0
    %509 = vmatprep.mubr.bf16.mxu0 0
    %510 = vmatmul.mubr.bf16.gmra.mxu0 %v308
    %v511 = vpop.f32.mrf.mxu0
    %v512 = vadd.f32 %v424, %v511
    %v513 = vpop.f32.mrf.mxu0
    %v514 = vpop.f32.mrf.mxu0
    %v515 = vpop.f32.mrf.mxu0
    %516 = vdwg.mxu0
    %v517 = vadd.f32 %v297, %v512
    %518 = vset.pattern.permute.xlu0 2
    %519 = vperm.xlu0 %518, %v81
    %v520 = vpop.permute.xlu0 %519
    %vm521 = vcmp.eq.s32.totalorder %v520, %v89
    %v522 = vsel %vm521, 1, 0
    %v523 = vcvt.s32.f32 %v522
    %v524 = vpack.c.bf16 %v523, %v523
    %v525 = vld [vmem:[#allocation5 + $0x80] sm:$0xf]
    %v526 = vld [vmem:[#allocation5 + $0x84] sm:$0xf]
    %v527 = vld [vmem:[#allocation5 + $0x88] sm:$0xf]
    %v528 = vld [vmem:[#allocation5 + $0x8c] sm:$0xf]
    %v529 = vld [vmem:[#allocation5 + $0x90] sm:$0xf]
    %v530 = vld [vmem:[#allocation5 + $0x94] sm:$0xf]
    %v531 = vld [vmem:[#allocation5 + $0x98] sm:$0xf]
    %v532 = vld [vmem:[#allocation5 + $0x9c] sm:$0xf]
    %v533 = vld [vmem:[#allocation5 + $0xa0] sm:$0xf]
    %v534 = vld [vmem:[#allocation5 + $0xa4] sm:$0xf]
    %v535 = vld [vmem:[#allocation5 + $0xa8] sm:$0xf]
    %v536 = vld [vmem:[#allocation5 + $0xac] sm:$0xf]
    %v537 = vld [vmem:[#allocation5 + $0xb0] sm:$0xf]
    %v538 = vld [vmem:[#allocation5 + $0xb4] sm:$0xf]
    %v539 = vld [vmem:[#allocation5 + $0xb8] sm:$0xf]
    %v540 = vld [vmem:[#allocation5 + $0xbc] sm:$0xf]
    %v541 = vld [vmem:[#allocation7 + $0x80] sm:$0xf]
    %v542 = vld [vmem:[#allocation7 + $0x84] sm:$0xf]
    %v543 = vld [vmem:[#allocation7 + $0x88] sm:$0xf]
    %v544 = vld [vmem:[#allocation7 + $0x8c] sm:$0xf]
    %v545 = vld [vmem:[#allocation7 + $0x90] sm:$0xf]
    %v546 = vld [vmem:[#allocation7 + $0x94] sm:$0xf]
    %v547 = vld [vmem:[#allocation7 + $0x98] sm:$0xf]
    %v548 = vld [vmem:[#allocation7 + $0x9c] sm:$0xf]
    %v549 = vld [vmem:[#allocation7 + $0xa0] sm:$0xf]
    %v550 = vld [vmem:[#allocation7 + $0xa4] sm:$0xf]
    %v551 = vld [vmem:[#allocation7 + $0xa8] sm:$0xf]
    %v552 = vld [vmem:[#allocation7 + $0xac] sm:$0xf]
    %v553 = vld [vmem:[#allocation7 + $0xb0] sm:$0xf]
    %v554 = vld [vmem:[#allocation7 + $0xb4] sm:$0xf]
    %v555 = vld [vmem:[#allocation7 + $0xb8] sm:$0xf]
    %v556 = vld [vmem:[#allocation7 + $0xbc] sm:$0xf]
    %v573 = vunpack.c.l.b16 %v541
    %v574 = vunpack.c.l.b16 %v542
    %v575 = vunpack.c.l.b16 %v543
    %v576 = vunpack.c.l.b16 %v544
    %v577 = vunpack.c.l.b16 %v545
    %v578 = vunpack.c.l.b16 %v546
    %v579 = vunpack.c.l.b16 %v547
    %v580 = vunpack.c.l.b16 %v548
    %v581 = vunpack.c.l.b16 %v549
    %v582 = vunpack.c.l.b16 %v550
    %v583 = vunpack.c.l.b16 %v551
    %v584 = vunpack.c.l.b16 %v552
    %v585 = vunpack.c.l.b16 %v553
    %v586 = vunpack.c.l.b16 %v554
    %v587 = vunpack.c.l.b16 %v555
    %v588 = vunpack.c.l.b16 %v556
    %v589 = vpack.c.b16 %v574, %v573
    %v590 = vpack.c.b16 %v576, %v575
    %v591 = vpack.c.b16 %v578, %v577
    %v592 = vpack.c.b16 %v580, %v579
    %v593 = vpack.c.b16 %v582, %v581
    %v594 = vpack.c.b16 %v584, %v583
    %v595 = vpack.c.b16 %v586, %v585
    %v596 = vpack.c.b16 %v588, %v587
    %605 = vmatprep.subr.bf16.mxu0 0
    %606 = vmatpush1.bf16.msra.mxu0 %v596
    %607 = vmatprep.subr.bf16.mxu0 0
    %608 = vmatpush1.bf16.msra.mxu0 %v595
    %609 = vmatprep.subr.bf16.mxu0 0
    %610 = vmatpush1.bf16.msra.mxu0 %v594
    %611 = vmatprep.subr.bf16.mxu0 0
    %612 = vmatpush1.bf16.msra.mxu0 %v593
    %613 = vmatprep.subr.bf16.mxu0 0
    %614 = vmatpush1.bf16.msra.mxu0 %v592
    %615 = vmatprep.subr.bf16.mxu0 0
    %616 = vmatpush1.bf16.msra.mxu0 %v591
    %617 = vmatprep.subr.bf16.mxu0 0
    %618 = vmatpush1.bf16.msra.mxu0 %v590
    %619 = vmatprep.subr.bf16.mxu0 0
    %620 = vmatpush1.bf16.msra.mxu0 %v589
    %621 = vmatprep.subr.bf16.mxu0 0
    %622 = vmatpush2.bf16.msra.mxu0 0
    %623 = vmatprep.subr.bf16.mxu0 0
    %624 = vmatpush2.bf16.msra.mxu0 0
    %625 = vmatprep.subr.bf16.mxu0 0
    %626 = vmatpush2.bf16.msra.mxu0 0
    %627 = vmatprep.subr.bf16.mxu0 0
    %628 = vmatpush2.bf16.msra.mxu0 0
    %629 = vmatprep.subr.bf16.mxu0 0
    %630 = vmatpush2.bf16.msra.mxu0 0
    %631 = vmatprep.subr.bf16.mxu0 0
    %632 = vmatpush2.bf16.msra.mxu0 0
    %633 = vmatprep.subr.bf16.mxu0 0
    %634 = vmatpush2.bf16.msra.mxu0 0
    %635 = vmatprep.subr.bf16.mxu0 0
    %636 = vmatpush2.bf16.msra.mxu0 0
    %637 = vmatprep.mubr.bf16.mxu0 0
    %638 = vmatmul.mubr.bf16.gmra.mxu0 %v524
    %v639 = vpop.f32.mrf.mxu0
    %v640 = vadd.f32 0.0, %v639
    %v641 = vpop.f32.mrf.mxu0
    %v642 = vpop.f32.mrf.mxu0
    %v643 = vpop.f32.mrf.mxu0
    %644 = vdwg.mxu0
    %v661 = vunpack.c.l.b16 %v525
    %v662 = vunpack.c.l.b16 %v526
    %v663 = vunpack.c.l.b16 %v527
    %v664 = vunpack.c.l.b16 %v528
    %v665 = vunpack.c.l.b16 %v529
    %v666 = vunpack.c.l.b16 %v530
    %v667 = vunpack.c.l.b16 %v531
    %v668 = vunpack.c.l.b16 %v532
    %v669 = vunpack.c.l.b16 %v533
    %v670 = vunpack.c.l.b16 %v534
    %v671 = vunpack.c.l.b16 %v535
    %v672 = vunpack.c.l.b16 %v536
    %v673 = vunpack.c.l.b16 %v537
    %v674 = vunpack.c.l.b16 %v538
    %v675 = vunpack.c.l.b16 %v539
    %v676 = vunpack.c.l.b16 %v540
    %v677 = vpack.c.b16 %v662, %v661
    %v678 = vpack.c.b16 %v664, %v663
    %v679 = vpack.c.b16 %v666, %v665
    %v680 = vpack.c.b16 %v668, %v667
    %v681 = vpack.c.b16 %v670, %v669
    %v682 = vpack.c.b16 %v672, %v671
    %v683 = vpack.c.b16 %v674, %v673
    %v684 = vpack.c.b16 %v676, %v675
    %693 = vmatprep.subr.bf16.mxu0 0
    %694 = vmatpush1.bf16.msra.mxu0 %v684
    %695 = vmatprep.subr.bf16.mxu0 0
    %696 = vmatpush1.bf16.msra.mxu0 %v683
    %697 = vmatprep.subr.bf16.mxu0 0
    %698 = vmatpush1.bf16.msra.mxu0 %v682
    %699 = vmatprep.subr.bf16.mxu0 0
    %700 = vmatpush1.bf16.msra.mxu0 %v681
    %701 = vmatprep.subr.bf16.mxu0 0
    %702 = vmatpush1.bf16.msra.mxu0 %v680
    %703 = vmatprep.subr.bf16.mxu0 0
    %704 = vmatpush1.bf16.msra.mxu0 %v679
    %705 = vmatprep.subr.bf16.mxu0 0
    %706 = vmatpush1.bf16.msra.mxu0 %v678
    %707 = vmatprep.subr.bf16.mxu0 0
    %708 = vmatpush1.bf16.msra.mxu0 %v677
    %709 = vmatprep.subr.bf16.mxu0 0
    %710 = vmatpush2.bf16.msra.mxu0 0
    %711 = vmatprep.subr.bf16.mxu0 0
    %712 = vmatpush2.bf16.msra.mxu0 0
    %713 = vmatprep.subr.bf16.mxu0 0
    %714 = vmatpush2.bf16.msra.mxu0 0
    %715 = vmatprep.subr.bf16.mxu0 0
    %716 = vmatpush2.bf16.msra.mxu0 0
    %717 = vmatprep.subr.bf16.mxu0 0
    %718 = vmatpush2.bf16.msra.mxu0 0
    %719 = vmatprep.subr.bf16.mxu0 0
    %720 = vmatpush2.bf16.msra.mxu0 0
    %721 = vmatprep.subr.bf16.mxu0 0
    %722 = vmatpush2.bf16.msra.mxu0 0
    %723 = vmatprep.subr.bf16.mxu0 0
    %724 = vmatpush2.bf16.msra.mxu0 0
    %725 = vmatprep.mubr.bf16.mxu0 0
    %726 = vmatmul.mubr.bf16.gmra.mxu0 %v524
    %v727 = vpop.f32.mrf.mxu0
    %v728 = vadd.f32 %v640, %v727
    %v729 = vpop.f32.mrf.mxu0
    %v730 = vpop.f32.mrf.mxu0
    %v731 = vpop.f32.mrf.mxu0
    %732 = vdwg.mxu0
    %v733 = vadd.f32 %v517, %v728
    %734 = vset.pattern.permute.xlu0 3
    %735 = vperm.xlu0 %734, %v81
    %v736 = vpop.permute.xlu0 %735
    %vm737 = vcmp.eq.s32.totalorder %v736, %v89
    %v738 = vsel %vm737, 1, 0
    %v739 = vcvt.s32.f32 %v738
    %v740 = vpack.c.bf16 %v739, %v739
    %v741 = vld [vmem:[#allocation5 + $0xc0] sm:$0xf]
    %v742 = vld [vmem:[#allocation5 + $0xc4] sm:$0xf]
    %v743 = vld [vmem:[#allocation5 + $0xc8] sm:$0xf]
    %v744 = vld [vmem:[#allocation5 + $0xcc] sm:$0xf]
    %v745 = vld [vmem:[#allocation5 + $0xd0] sm:$0xf]
    %v746 = vld [vmem:[#allocation5 + $0xd4] sm:$0xf]
    %v747 = vld [vmem:[#allocation5 + $0xd8] sm:$0xf]
    %v748 = vld [vmem:[#allocation5 + $0xdc] sm:$0xf]
    %v749 = vld [vmem:[#allocation5 + $0xe0] sm:$0xf]
    %v750 = vld [vmem:[#allocation5 + $0xe4] sm:$0xf]
    %v751 = vld [vmem:[#allocation5 + $0xe8] sm:$0xf]
    %v752 = vld [vmem:[#allocation5 + $0xec] sm:$0xf]
    %v753 = vld [vmem:[#allocation5 + $0xf0] sm:$0xf]
    %v754 = vld [vmem:[#allocation5 + $0xf4] sm:$0xf]
    %v755 = vld [vmem:[#allocation5 + $0xf8] sm:$0xf]
    %v756 = vld [vmem:[#allocation5 + $0xfc] sm:$0xf]
    %v757 = vld [vmem:[#allocation7 + $0xc0] sm:$0xf]
    %v758 = vld [vmem:[#allocation7 + $0xc4] sm:$0xf]
    %v759 = vld [vmem:[#allocation7 + $0xc8] sm:$0xf]
    %v760 = vld [vmem:[#allocation7 + $0xcc] sm:$0xf]
    %v761 = vld [vmem:[#allocation7 + $0xd0] sm:$0xf]
    %v762 = vld [vmem:[#allocation7 + $0xd4] sm:$0xf]
    %v763 = vld [vmem:[#allocation7 + $0xd8] sm:$0xf]
    %v764 = vld [vmem:[#allocation7 + $0xdc] sm:$0xf]
    %v765 = vld [vmem:[#allocation7 + $0xe0] sm:$0xf]
    %v766 = vld [vmem:[#allocation7 + $0xe4] sm:$0xf]
    %v767 = vld [vmem:[#allocation7 + $0xe8] sm:$0xf]
    %v768 = vld [vmem:[#allocation7 + $0xec] sm:$0xf]
    %v769 = vld [vmem:[#allocation7 + $0xf0] sm:$0xf]
    %v770 = vld [vmem:[#allocation7 + $0xf4] sm:$0xf]
    %v771 = vld [vmem:[#allocation7 + $0xf8] sm:$0xf]
    %v772 = vld [vmem:[#allocation7 + $0xfc] sm:$0xf]
    %v789 = vunpack.c.l.b16 %v757
    %v790 = vunpack.c.l.b16 %v758
    %v791 = vunpack.c.l.b16 %v759
    %v792 = vunpack.c.l.b16 %v760
    %v793 = vunpack.c.l.b16 %v761
    %v794 = vunpack.c.l.b16 %v762
    %v795 = vunpack.c.l.b16 %v763
    %v796 = vunpack.c.l.b16 %v764
    %v797 = vunpack.c.l.b16 %v765
    %v798 = vunpack.c.l.b16 %v766
    %v799 = vunpack.c.l.b16 %v767
    %v800 = vunpack.c.l.b16 %v768
    %v801 = vunpack.c.l.b16 %v769
    %v802 = vunpack.c.l.b16 %v770
    %v803 = vunpack.c.l.b16 %v771
    %v804 = vunpack.c.l.b16 %v772
    %v805 = vpack.c.b16 %v790, %v789
    %v806 = vpack.c.b16 %v792, %v791
    %v807 = vpack.c.b16 %v794, %v793
    %v808 = vpack.c.b16 %v796, %v795
    %v809 = vpack.c.b16 %v798, %v797
    %v810 = vpack.c.b16 %v800, %v799
    %v811 = vpack.c.b16 %v802, %v801
    %v812 = vpack.c.b16 %v804, %v803
    %821 = vmatprep.subr.bf16.mxu0 0
    %822 = vmatpush1.bf16.msra.mxu0 %v812
    %823 = vmatprep.subr.bf16.mxu0 0
    %824 = vmatpush1.bf16.msra.mxu0 %v811
    %825 = vmatprep.subr.bf16.mxu0 0
    %826 = vmatpush1.bf16.msra.mxu0 %v810
    %827 = vmatprep.subr.bf16.mxu0 0
    %828 = vmatpush1.bf16.msra.mxu0 %v809
    %829 = vmatprep.subr.bf16.mxu0 0
    %830 = vmatpush1.bf16.msra.mxu0 %v808
    %831 = vmatprep.subr.bf16.mxu0 0
    %832 = vmatpush1.bf16.msra.mxu0 %v807
    %833 = vmatprep.subr.bf16.mxu0 0
    %834 = vmatpush1.bf16.msra.mxu0 %v806
    %835 = vmatprep.subr.bf16.mxu0 0
    %836 = vmatpush1.bf16.msra.mxu0 %v805
    %837 = vmatprep.subr.bf16.mxu0 0
    %838 = vmatpush2.bf16.msra.mxu0 0
    %839 = vmatprep.subr.bf16.mxu0 0
    %840 = vmatpush2.bf16.msra.mxu0 0
    %841 = vmatprep.subr.bf16.mxu0 0
    %842 = vmatpush2.bf16.msra.mxu0 0
    %843 = vmatprep.subr.bf16.mxu0 0
    %844 = vmatpush2.bf16.msra.mxu0 0
    %845 = vmatprep.subr.bf16.mxu0 0
    %846 = vmatpush2.bf16.msra.mxu0 0
    %847 = vmatprep.subr.bf16.mxu0 0
    %848 = vmatpush2.bf16.msra.mxu0 0
    %849 = vmatprep.subr.bf16.mxu0 0
    %850 = vmatpush2.bf16.msra.mxu0 0
    %851 = vmatprep.subr.bf16.mxu0 0
    %852 = vmatpush2.bf16.msra.mxu0 0
    %853 = vmatprep.mubr.bf16.mxu0 0
    %854 = vmatmul.mubr.bf16.gmra.mxu0 %v740
    %v855 = vpop.f32.mrf.mxu0
    %v856 = vadd.f32 0.0, %v855
    %v857 = vpop.f32.mrf.mxu0
    %v858 = vpop.f32.mrf.mxu0
    %v859 = vpop.f32.mrf.mxu0
    %860 = vdwg.mxu0
    %v877 = vunpack.c.l.b16 %v741
    %v878 = vunpack.c.l.b16 %v742
    %v879 = vunpack.c.l.b16 %v743
    %v880 = vunpack.c.l.b16 %v744
    %v881 = vunpack.c.l.b16 %v745
    %v882 = vunpack.c.l.b16 %v746
    %v883 = vunpack.c.l.b16 %v747
    %v884 = vunpack.c.l.b16 %v748
    %v885 = vunpack.c.l.b16 %v749
    %v886 = vunpack.c.l.b16 %v750
    %v887 = vunpack.c.l.b16 %v751
    %v888 = vunpack.c.l.b16 %v752
    %v889 = vunpack.c.l.b16 %v753
    %v890 = vunpack.c.l.b16 %v754
    %v891 = vunpack.c.l.b16 %v755
    %v892 = vunpack.c.l.b16 %v756
    %v893 = vpack.c.b16 %v878, %v877
    %v894 = vpack.c.b16 %v880, %v879
    %v895 = vpack.c.b16 %v882, %v881
    %v896 = vpack.c.b16 %v884, %v883
    %v897 = vpack.c.b16 %v886, %v885
    %v898 = vpack.c.b16 %v888, %v887
    %v899 = vpack.c.b16 %v890, %v889
    %v900 = vpack.c.b16 %v892, %v891
    %909 = vmatprep.subr.bf16.mxu0 0
    %910 = vmatpush1.bf16.msra.mxu0 %v900
    %911 = vmatprep.subr.bf16.mxu0 0
    %912 = vmatpush1.bf16.msra.mxu0 %v899
    %913 = vmatprep.subr.bf16.mxu0 0
    %914 = vmatpush1.bf16.msra.mxu0 %v898
    %915 = vmatprep.subr.bf16.mxu0 0
    %916 = vmatpush1.bf16.msra.mxu0 %v897
    %917 = vmatprep.subr.bf16.mxu0 0
    %918 = vmatpush1.bf16.msra.mxu0 %v896
    %919 = vmatprep.subr.bf16.mxu0 0
    %920 = vmatpush1.bf16.msra.mxu0 %v895
    %921 = vmatprep.subr.bf16.mxu0 0
    %922 = vmatpush1.bf16.msra.mxu0 %v894
    %923 = vmatprep.subr.bf16.mxu0 0
    %924 = vmatpush1.bf16.msra.mxu0 %v893
    %925 = vmatprep.subr.bf16.mxu0 0
    %926 = vmatpush2.bf16.msra.mxu0 0
    %927 = vmatprep.subr.bf16.mxu0 0
    %928 = vmatpush2.bf16.msra.mxu0 0
    %929 = vmatprep.subr.bf16.mxu0 0
    %930 = vmatpush2.bf16.msra.mxu0 0
    %931 = vmatprep.subr.bf16.mxu0 0
    %932 = vmatpush2.bf16.msra.mxu0 0
    %933 = vmatprep.subr.bf16.mxu0 0
    %934 = vmatpush2.bf16.msra.mxu0 0
    %935 = vmatprep.subr.bf16.mxu0 0
    %936 = vmatpush2.bf16.msra.mxu0 0
    %937 = vmatprep.subr.bf16.mxu0 0
    %938 = vmatpush2.bf16.msra.mxu0 0
    %939 = vmatprep.subr.bf16.mxu0 0
    %940 = vmatpush2.bf16.msra.mxu0 0
    %941 = vmatprep.mubr.bf16.mxu0 0
    %942 = vmatmul.mubr.bf16.gmra.mxu0 %v740
    %v943 = vpop.f32.mrf.mxu0
    %v944 = vadd.f32 %v856, %v943
    %v945 = vpop.f32.mrf.mxu0
    %v946 = vpop.f32.mrf.mxu0
    %v947 = vpop.f32.mrf.mxu0
    %948 = vdwg.mxu0
    %v949 = vadd.f32 %v733, %v944
    %950 = vset.pattern.permute.xlu0 4
    %951 = vperm.xlu0 %950, %v81
    %v952 = vpop.permute.xlu0 %951
    %vm953 = vcmp.eq.s32.totalorder %v952, %v89
    %v954 = vsel %vm953, 1, 0
    %v955 = vcvt.s32.f32 %v954
    %v956 = vpack.c.bf16 %v955, %v955
    %v957 = vld [vmem:[#allocation5 + $0x100] sm:$0xf]
    %v958 = vld [vmem:[#allocation5 + $0x104] sm:$0xf]
    %v959 = vld [vmem:[#allocation5 + $0x108] sm:$0xf]
    %v960 = vld [vmem:[#allocation5 + $0x10c] sm:$0xf]
    %v961 = vld [vmem:[#allocation5 + $0x110] sm:$0xf]
    %v962 = vld [vmem:[#allocation5 + $0x114] sm:$0xf]
    %v963 = vld [vmem:[#allocation5 + $0x118] sm:$0xf]
    %v964 = vld [vmem:[#allocation5 + $0x11c] sm:$0xf]
    %v965 = vld [vmem:[#allocation5 + $0x120] sm:$0xf]
    %v966 = vld [vmem:[#allocation5 + $0x124] sm:$0xf]
    %v967 = vld [vmem:[#allocation5 + $0x128] sm:$0xf]
    %v968 = vld [vmem:[#allocation5 + $0x12c] sm:$0xf]
    %v969 = vld [vmem:[#allocation5 + $0x130] sm:$0xf]
    %v970 = vld [vmem:[#allocation5 + $0x134] sm:$0xf]
    %v971 = vld [vmem:[#allocation5 + $0x138] sm:$0xf]
    %v972 = vld [vmem:[#allocation5 + $0x13c] sm:$0xf]
    %v973 = vld [vmem:[#allocation7 + $0x100] sm:$0xf]
    %v974 = vld [vmem:[#allocation7 + $0x104] sm:$0xf]
    %v975 = vld [vmem:[#allocation7 + $0x108] sm:$0xf]
    %v976 = vld [vmem:[#allocation7 + $0x10c] sm:$0xf]
    %v977 = vld [vmem:[#allocation7 + $0x110] sm:$0xf]
    %v978 = vld [vmem:[#allocation7 + $0x114] sm:$0xf]
    %v979 = vld [vmem:[#allocation7 + $0x118] sm:$0xf]
    %v980 = vld [vmem:[#allocation7 + $0x11c] sm:$0xf]
    %v981 = vld [vmem:[#allocation7 + $0x120] sm:$0xf]
    %v982 = vld [vmem:[#allocation7 + $0x124] sm:$0xf]
    %v983 = vld [vmem:[#allocation7 + $0x128] sm:$0xf]
    %v984 = vld [vmem:[#allocation7 + $0x12c] sm:$0xf]
    %v985 = vld [vmem:[#allocation7 + $0x130] sm:$0xf]
    %v986 = vld [vmem:[#allocation7 + $0x134] sm:$0xf]
    %v987 = vld [vmem:[#allocation7 + $0x138] sm:$0xf]
    %v988 = vld [vmem:[#allocation7 + $0x13c] sm:$0xf]
    %v1005 = vunpack.c.l.b16 %v973
    %v1006 = vunpack.c.l.b16 %v974
    %v1007 = vunpack.c.l.b16 %v975
    %v1008 = vunpack.c.l.b16 %v976
    %v1009 = vunpack.c.l.b16 %v977
    %v1010 = vunpack.c.l.b16 %v978
    %v1011 = vunpack.c.l.b16 %v979
    %v1012 = vunpack.c.l.b16 %v980
    %v1013 = vunpack.c.l.b16 %v981
    %v1014 = vunpack.c.l.b16 %v982
    %v1015 = vunpack.c.l.b16 %v983
    %v1016 = vunpack.c.l.b16 %v984
    %v1017 = vunpack.c.l.b16 %v985
    %v1018 = vunpack.c.l.b16 %v986
    %v1019 = vunpack.c.l.b16 %v987
    %v1020 = vunpack.c.l.b16 %v988
    %v1021 = vpack.c.b16 %v1006, %v1005
    %v1022 = vpack.c.b16 %v1008, %v1007
    %v1023 = vpack.c.b16 %v1010, %v1009
    %v1024 = vpack.c.b16 %v1012, %v1011
    %v1025 = vpack.c.b16 %v1014, %v1013
    %v1026 = vpack.c.b16 %v1016, %v1015
    %v1027 = vpack.c.b16 %v1018, %v1017
    %v1028 = vpack.c.b16 %v1020, %v1019
    %1037 = vmatprep.subr.bf16.mxu0 0
    %1038 = vmatpush1.bf16.msra.mxu0 %v1028
    %1039 = vmatprep.subr.bf16.mxu0 0
    %1040 = vmatpush1.bf16.msra.mxu0 %v1027
    %1041 = vmatprep.subr.bf16.mxu0 0
    %1042 = vmatpush1.bf16.msra.mxu0 %v1026
    %1043 = vmatprep.subr.bf16.mxu0 0
    %1044 = vmatpush1.bf16.msra.mxu0 %v1025
    %1045 = vmatprep.subr.bf16.mxu0 0
    %1046 = vmatpush1.bf16.msra.mxu0 %v1024
    %1047 = vmatprep.subr.bf16.mxu0 0
    %1048 = vmatpush1.bf16.msra.mxu0 %v1023
    %1049 = vmatprep.subr.bf16.mxu0 0
    %1050 = vmatpush1.bf16.msra.mxu0 %v1022
    %1051 = vmatprep.subr.bf16.mxu0 0
    %1052 = vmatpush1.bf16.msra.mxu0 %v1021
    %1053 = vmatprep.subr.bf16.mxu0 0
    %1054 = vmatpush2.bf16.msra.mxu0 0
    %1055 = vmatprep.subr.bf16.mxu0 0
    %1056 = vmatpush2.bf16.msra.mxu0 0
    %1057 = vmatprep.subr.bf16.mxu0 0
    %1058 = vmatpush2.bf16.msra.mxu0 0
    %1059 = vmatprep.subr.bf16.mxu0 0
    %1060 = vmatpush2.bf16.msra.mxu0 0
    %1061 = vmatprep.subr.bf16.mxu0 0
    %1062 = vmatpush2.bf16.msra.mxu0 0
    %1063 = vmatprep.subr.bf16.mxu0 0
    %1064 = vmatpush2.bf16.msra.mxu0 0
    %1065 = vmatprep.subr.bf16.mxu0 0
    %1066 = vmatpush2.bf16.msra.mxu0 0
    %1067 = vmatprep.subr.bf16.mxu0 0
    %1068 = vmatpush2.bf16.msra.mxu0 0
    %1069 = vmatprep.mubr.bf16.mxu0 0
    %1070 = vmatmul.mubr.bf16.gmra.mxu0 %v956
    %v1071 = vpop.f32.mrf.mxu0
    %v1072 = vadd.f32 0.0, %v1071
    %v1073 = vpop.f32.mrf.mxu0
    %v1074 = vpop.f32.mrf.mxu0
    %v1075 = vpop.f32.mrf.mxu0
    %1076 = vdwg.mxu0
    %v1093 = vunpack.c.l.b16 %v957
    %v1094 = vunpack.c.l.b16 %v958
    %v1095 = vunpack.c.l.b16 %v959
    %v1096 = vunpack.c.l.b16 %v960
    %v1097 = vunpack.c.l.b16 %v961
    %v1098 = vunpack.c.l.b16 %v962
    %v1099 = vunpack.c.l.b16 %v963
    %v1100 = vunpack.c.l.b16 %v964
    %v1101 = vunpack.c.l.b16 %v965
    %v1102 = vunpack.c.l.b16 %v966
    %v1103 = vunpack.c.l.b16 %v967
    %v1104 = vunpack.c.l.b16 %v968
    %v1105 = vunpack.c.l.b16 %v969
    %v1106 = vunpack.c.l.b16 %v970
    %v1107 = vunpack.c.l.b16 %v971
    %v1108 = vunpack.c.l.b16 %v972
    %v1109 = vpack.c.b16 %v1094, %v1093
    %v1110 = vpack.c.b16 %v1096, %v1095
    %v1111 = vpack.c.b16 %v1098, %v1097
    %v1112 = vpack.c.b16 %v1100, %v1099
    %v1113 = vpack.c.b16 %v1102, %v1101
    %v1114 = vpack.c.b16 %v1104, %v1103
    %v1115 = vpack.c.b16 %v1106, %v1105
    %v1116 = vpack.c.b16 %v1108, %v1107
    %1125 = vmatprep.subr.bf16.mxu0 0
    %1126 = vmatpush1.bf16.msra.mxu0 %v1116
    %1127 = vmatprep.subr.bf16.mxu0 0
    %1128 = vmatpush1.bf16.msra.mxu0 %v1115
    %1129 = vmatprep.subr.bf16.mxu0 0
    %1130 = vmatpush1.bf16.msra.mxu0 %v1114
    %1131 = vmatprep.subr.bf16.mxu0 0
    %1132 = vmatpush1.bf16.msra.mxu0 %v1113
    %1133 = vmatprep.subr.bf16.mxu0 0
    %1134 = vmatpush1.bf16.msra.mxu0 %v1112
    %1135 = vmatprep.subr.bf16.mxu0 0
    %1136 = vmatpush1.bf16.msra.mxu0 %v1111
    %1137 = vmatprep.subr.bf16.mxu0 0
    %1138 = vmatpush1.bf16.msra.mxu0 %v1110
    %1139 = vmatprep.subr.bf16.mxu0 0
    %1140 = vmatpush1.bf16.msra.mxu0 %v1109
    %1141 = vmatprep.subr.bf16.mxu0 0
    %1142 = vmatpush2.bf16.msra.mxu0 0
    %1143 = vmatprep.subr.bf16.mxu0 0
    %1144 = vmatpush2.bf16.msra.mxu0 0
    %1145 = vmatprep.subr.bf16.mxu0 0
    %1146 = vmatpush2.bf16.msra.mxu0 0
    %1147 = vmatprep.subr.bf16.mxu0 0
    %1148 = vmatpush2.bf16.msra.mxu0 0
    %1149 = vmatprep.subr.bf16.mxu0 0
    %1150 = vmatpush2.bf16.msra.mxu0 0
    %1151 = vmatprep.subr.bf16.mxu0 0
    %1152 = vmatpush2.bf16.msra.mxu0 0
    %1153 = vmatprep.subr.bf16.mxu0 0
    %1154 = vmatpush2.bf16.msra.mxu0 0
    %1155 = vmatprep.subr.bf16.mxu0 0
    %1156 = vmatpush2.bf16.msra.mxu0 0
    %1157 = vmatprep.mubr.bf16.mxu0 0
    %1158 = vmatmul.mubr.bf16.gmra.mxu0 %v956
    %v1159 = vpop.f32.mrf.mxu0
    %v1160 = vadd.f32 %v1072, %v1159
    %v1161 = vpop.f32.mrf.mxu0
    %v1162 = vpop.f32.mrf.mxu0
    %v1163 = vpop.f32.mrf.mxu0
    %1164 = vdwg.mxu0
    %v1165 = vadd.f32 %v949, %v1160
    %v1166 = vld [vmem:[#allocation8] sm:$0xf]
    %v1167 = vld [vmem:[#allocation8 + $0x4] sm:$0xf]
    %v1168 = vld [vmem:[#allocation8 + $0x8] sm:$0xf]
    %v1169 = vld [vmem:[#allocation8 + $0xc] sm:$0xf]
    %v1170 = vld [vmem:[#allocation8 + $0x10] sm:$0xf]
    %v1171 = vld [vmem:[#allocation8 + $0x14] sm:$0xf]
    %v1172 = vld [vmem:[#allocation8 + $0x18] sm:$0xf]
    %v1173 = vld [vmem:[#allocation8 + $0x1c] sm:$0xf]
    %v1174 = vld [vmem:[#allocation8 + $0x20] sm:$0xf]
    %v1175 = vld [vmem:[#allocation8 + $0x24] sm:$0xf]
    %v1176 = vld [vmem:[#allocation8 + $0x28] sm:$0xf]
    %v1177 = vld [vmem:[#allocation8 + $0x2c] sm:$0xf]
    %v1178 = vld [vmem:[#allocation8 + $0x30] sm:$0xf]
    %v1179 = vld [vmem:[#allocation8 + $0x34] sm:$0xf]
    %v1180 = vld [vmem:[#allocation8 + $0x38] sm:$0xf]
    %v1181 = vld [vmem:[#allocation8 + $0x3c] sm:$0xf]
    %v1182 = vpack.c.bf16 %v1165, %v1165
    %v1183 = vunpack.c.l.bf16 %v1182
    %v1184 = vsub.f32 %v1165, %v1183
    %v1185 = vpack.c.bf16 %v1184, %v1184
    %v1202 = vunpack.c.l.b16 %v1166
    %v1203 = vunpack.c.l.b16 %v1167
    %v1204 = vunpack.c.l.b16 %v1168
    %v1205 = vunpack.c.l.b16 %v1169
    %v1206 = vunpack.c.l.b16 %v1170
    %v1207 = vunpack.c.l.b16 %v1171
    %v1208 = vunpack.c.l.b16 %v1172
    %v1209 = vunpack.c.l.b16 %v1173
    %v1210 = vunpack.c.l.b16 %v1174
    %v1211 = vunpack.c.l.b16 %v1175
    %v1212 = vunpack.c.l.b16 %v1176
    %v1213 = vunpack.c.l.b16 %v1177
    %v1214 = vunpack.c.l.b16 %v1178
    %v1215 = vunpack.c.l.b16 %v1179
    %v1216 = vunpack.c.l.b16 %v1180
    %v1217 = vunpack.c.l.b16 %v1181
    %v1218 = vpack.c.b16 %v1203, %v1202
    %v1219 = vpack.c.b16 %v1205, %v1204
    %v1220 = vpack.c.b16 %v1207, %v1206
    %v1221 = vpack.c.b16 %v1209, %v1208
    %v1222 = vpack.c.b16 %v1211, %v1210
    %v1223 = vpack.c.b16 %v1213, %v1212
    %v1224 = vpack.c.b16 %v1215, %v1214
    %v1225 = vpack.c.b16 %v1217, %v1216
    %1234 = vmatprep.subr.bf16.mxu0 0
    %1235 = vmatpush1.bf16.msra.mxu0 %v1225
    %1236 = vmatprep.subr.bf16.mxu0 0
    %1237 = vmatpush1.bf16.msra.mxu0 %v1224
    %1238 = vmatprep.subr.bf16.mxu0 0
    %1239 = vmatpush1.bf16.msra.mxu0 %v1223
    %1240 = vmatprep.subr.bf16.mxu0 0
    %1241 = vmatpush1.bf16.msra.mxu0 %v1222
    %1242 = vmatprep.subr.bf16.mxu0 0
    %1243 = vmatpush1.bf16.msra.mxu0 %v1221
    %1244 = vmatprep.subr.bf16.mxu0 0
    %1245 = vmatpush1.bf16.msra.mxu0 %v1220
    %1246 = vmatprep.subr.bf16.mxu0 0
    %1247 = vmatpush1.bf16.msra.mxu0 %v1219
    %1248 = vmatprep.subr.bf16.mxu0 0
    %1249 = vmatpush1.bf16.msra.mxu0 %v1218
    %1250 = vmatprep.subr.bf16.mxu0 0
    %1251 = vmatpush2.bf16.msra.mxu0 0
    %1252 = vmatprep.subr.bf16.mxu0 0
    %1253 = vmatpush2.bf16.msra.mxu0 0
    %1254 = vmatprep.subr.bf16.mxu0 0
    %1255 = vmatpush2.bf16.msra.mxu0 0
    %1256 = vmatprep.subr.bf16.mxu0 0
    %1257 = vmatpush2.bf16.msra.mxu0 0
    %1258 = vmatprep.subr.bf16.mxu0 0
    %1259 = vmatpush2.bf16.msra.mxu0 0
    %1260 = vmatprep.subr.bf16.mxu0 0
    %1261 = vmatpush2.bf16.msra.mxu0 0
    %1262 = vmatprep.subr.bf16.mxu0 0
    %1263 = vmatpush2.bf16.msra.mxu0 0
    %1264 = vmatprep.subr.bf16.mxu0 0
    %1265 = vmatpush2.bf16.msra.mxu0 0
    %1266 = vmatprep.mubr.bf16.mxu0 0
    %1267 = vmatmul.mubr.bf16.gmra.mxu0 %v1185
    %v1268 = vpop.f32.mrf.mxu0
    %v1269 = vadd.f32 0.0, %v1268
    %v1270 = vpop.f32.mrf.mxu0
    %v1271 = vpop.f32.mrf.mxu0
    %v1272 = vpop.f32.mrf.mxu0
    %1273 = vdwg.mxu0
    %1274 = vmatprep.subr.bf16.mxu0 0
    %1275 = vmatpush1.bf16.msra.mxu0 %v1225
    %1276 = vmatprep.subr.bf16.mxu0 0
    %1277 = vmatpush1.bf16.msra.mxu0 %v1224
    %1278 = vmatprep.subr.bf16.mxu0 0
    %1279 = vmatpush1.bf16.msra.mxu0 %v1223
    %1280 = vmatprep.subr.bf16.mxu0 0
    %1281 = vmatpush1.bf16.msra.mxu0 %v1222
    %1282 = vmatprep.subr.bf16.mxu0 0
    %1283 = vmatpush1.bf16.msra.mxu0 %v1221
    %1284 = vmatprep.subr.bf16.mxu0 0
    %1285 = vmatpush1.bf16.msra.mxu0 %v1220
    %1286 = vmatprep.subr.bf16.mxu0 0
    %1287 = vmatpush1.bf16.msra.mxu0 %v1219
    %1288 = vmatprep.subr.bf16.mxu0 0
    %1289 = vmatpush1.bf16.msra.mxu0 %v1218
    %1290 = vmatprep.subr.bf16.mxu0 0
    %1291 = vmatpush2.bf16.msra.mxu0 0
    %1292 = vmatprep.subr.bf16.mxu0 0
    %1293 = vmatpush2.bf16.msra.mxu0 0
    %1294 = vmatprep.subr.bf16.mxu0 0
    %1295 = vmatpush2.bf16.msra.mxu0 0
    %1296 = vmatprep.subr.bf16.mxu0 0
    %1297 = vmatpush2.bf16.msra.mxu0 0
    %1298 = vmatprep.subr.bf16.mxu0 0
    %1299 = vmatpush2.bf16.msra.mxu0 0
    %1300 = vmatprep.subr.bf16.mxu0 0
    %1301 = vmatpush2.bf16.msra.mxu0 0
    %1302 = vmatprep.subr.bf16.mxu0 0
    %1303 = vmatpush2.bf16.msra.mxu0 0
    %1304 = vmatprep.subr.bf16.mxu0 0
    %1305 = vmatpush2.bf16.msra.mxu0 0
    %1306 = vmatprep.mubr.bf16.mxu0 0
    %1307 = vmatmul.mubr.bf16.gmra.mxu0 %v1182
    %v1308 = vpop.f32.mrf.mxu0
    %v1309 = vadd.f32 %v1269, %v1308
    %v1310 = vpop.f32.mrf.mxu0
    %v1311 = vpop.f32.mrf.mxu0
    %v1312 = vpop.f32.mrf.mxu0
    %1313 = vdwg.mxu0
    %v1314 = vmul.f32 %v1309, 0.03125
    %v1315 = vsub.f32 %v1165, %v1314
    %v1316 = vmul.f32 %v1315, %v1315
    %v1317 = vpack.c.bf16 %v1316, %v1316
    %v1318 = vunpack.c.l.bf16 %v1317
    %v1319 = vsub.f32 %v1316, %v1318
    %v1320 = vpack.c.bf16 %v1319, %v1319
    %1321 = vmatprep.subr.bf16.mxu0 0
    %1322 = vmatpush1.bf16.msra.mxu0 %v1225
    %1323 = vmatprep.subr.bf16.mxu0 0
    %1324 = vmatpush1.bf16.msra.mxu0 %v1224
    %1325 = vmatprep.subr.bf16.mxu0 0
    %1326 = vmatpush1.bf16.msra.mxu0 %v1223
    %1327 = vmatprep.subr.bf16.mxu0 0
    %1328 = vmatpush1.bf16.msra.mxu0 %v1222
    %1329 = vmatprep.subr.bf16.mxu0 0
    %1330 = vmatpush1.bf16.msra.mxu0 %v1221
    %1331 = vmatprep.subr.bf16.mxu0 0
    %1332 = vmatpush1.bf16.msra.mxu0 %v1220
    %1333 = vmatprep.subr.bf16.mxu0 0
    %1334 = vmatpush1.bf16.msra.mxu0 %v1219
    %1335 = vmatprep.subr.bf16.mxu0 0
    %1336 = vmatpush1.bf16.msra.mxu0 %v1218
    %1337 = vmatprep.subr.bf16.mxu0 0
    %1338 = vmatpush2.bf16.msra.mxu0 0
    %1339 = vmatprep.subr.bf16.mxu0 0
    %1340 = vmatpush2.bf16.msra.mxu0 0
    %1341 = vmatprep.subr.bf16.mxu0 0
    %1342 = vmatpush2.bf16.msra.mxu0 0
    %1343 = vmatprep.subr.bf16.mxu0 0
    %1344 = vmatpush2.bf16.msra.mxu0 0
    %1345 = vmatprep.subr.bf16.mxu0 0
    %1346 = vmatpush2.bf16.msra.mxu0 0
    %1347 = vmatprep.subr.bf16.mxu0 0
    %1348 = vmatpush2.bf16.msra.mxu0 0
    %1349 = vmatprep.subr.bf16.mxu0 0
    %1350 = vmatpush2.bf16.msra.mxu0 0
    %1351 = vmatprep.subr.bf16.mxu0 0
    %1352 = vmatpush2.bf16.msra.mxu0 0
    %1353 = vmatprep.mubr.bf16.mxu0 0
    %1354 = vmatmul.mubr.bf16.gmra.mxu0 %v1320
    %v1355 = vpop.f32.mrf.mxu0
    %v1356 = vadd.f32 0.0, %v1355
    %v1357 = vpop.f32.mrf.mxu0
    %v1358 = vpop.f32.mrf.mxu0
    %v1359 = vpop.f32.mrf.mxu0
    %1360 = vdwg.mxu0
    %1361 = vmatprep.subr.bf16.mxu0 0
    %1362 = vmatpush1.bf16.msra.mxu0 %v1225
    %1363 = vmatprep.subr.bf16.mxu0 0
    %1364 = vmatpush1.bf16.msra.mxu0 %v1224
    %1365 = vmatprep.subr.bf16.mxu0 0
    %1366 = vmatpush1.bf16.msra.mxu0 %v1223
    %1367 = vmatprep.subr.bf16.mxu0 0
    %1368 = vmatpush1.bf16.msra.mxu0 %v1222
    %1369 = vmatprep.subr.bf16.mxu0 0
    %1370 = vmatpush1.bf16.msra.mxu0 %v1221
    %1371 = vmatprep.subr.bf16.mxu0 0
    %1372 = vmatpush1.bf16.msra.mxu0 %v1220
    %1373 = vmatprep.subr.bf16.mxu0 0
    %1374 = vmatpush1.bf16.msra.mxu0 %v1219
    %1375 = vmatprep.subr.bf16.mxu0 0
    %1376 = vmatpush1.bf16.msra.mxu0 %v1218
    %1377 = vmatprep.subr.bf16.mxu0 0
    %1378 = vmatpush2.bf16.msra.mxu0 0
    %1379 = vmatprep.subr.bf16.mxu0 0
    %1380 = vmatpush2.bf16.msra.mxu0 0
    %1381 = vmatprep.subr.bf16.mxu0 0
    %1382 = vmatpush2.bf16.msra.mxu0 0
    %1383 = vmatprep.subr.bf16.mxu0 0
    %1384 = vmatpush2.bf16.msra.mxu0 0
    %1385 = vmatprep.subr.bf16.mxu0 0
    %1386 = vmatpush2.bf16.msra.mxu0 0
    %1387 = vmatprep.subr.bf16.mxu0 0
    %1388 = vmatpush2.bf16.msra.mxu0 0
    %1389 = vmatprep.subr.bf16.mxu0 0
    %1390 = vmatpush2.bf16.msra.mxu0 0
    %1391 = vmatprep.subr.bf16.mxu0 0
    %1392 = vmatpush2.bf16.msra.mxu0 0
    %1393 = vmatprep.mubr.bf16.mxu0 0
    %1394 = vmatmul.mubr.bf16.gmra.mxu0 %v1317
    %v1395 = vpop.f32.mrf.mxu0
    %v1396 = vadd.f32 %v1356, %v1395
    %v1397 = vpop.f32.mrf.mxu0
    %v1398 = vpop.f32.mrf.mxu0
    %v1399 = vpop.f32.mrf.mxu0
    %1400 = vdwg.mxu0
    %v1401 = vmul.f32 %v1396, 0.03125
    %v1402 = vadd.f32 %v1401, 1e-05
    %v1403 = vrsqrt.pop %v1402
    %v1404 = vmul.f32 %v1315, %v1403
    %v1405 = vld [vmem:[%s5] sm:$0x1]
    %v1407 = vlaneseq
    %v1408 = vshrl.u32 %v1407, 7
    %v1409 = vsub.s32 0, %v1408
    %v1410 = vrot.slane %v1405, %v1409
    %v1412 = vmul.f32 %v1404, %v1410
    %v1413 = vld [vmem:[%s6] sm:$0x1]
    %v1415 = vlaneseq
    %v1416 = vshrl.u32 %v1415, 7
    %v1417 = vsub.s32 0, %v1416
    %v1418 = vrot.slane %v1413, %v1417
    %v1420 = vadd.f32 %v1412, %v1418
    %1421 = vst [vmem:[#allocation10] sm:$0xff] %v1420
    // Predicated region
    $region46: #{tpu_custom_call.1} parent=1 // pred_check
      _
    $region47: #{tpu_custom_call.1} parent=1 // pred_check_branch
      %1423 = sbr.rel (0) target = $region49
    $region48: #{tpu_custom_call.1} parent=1 // pred_region
      %s1425 = ssub.s32 128, 128
      %1426 = vsyncadd [#allocation4], %s1425
      %s1428 = sshll.u32 [#allocation10], 4
      %s1429 = int_to_ptr.vmem [resolvable:$true] %s1428
      %1431 = dma.vmem_to_hbm [thread:$0]  %s1429, 128, %s7, [#allocation4]
    $region49: #{tpu_custom_call.1} parent=1 // pred_fallthru
      _
    // Predicated region
    $region50: #{tpu_custom_call.1} parent=1 // pred_check
      _
    $region51: #{tpu_custom_call.1} parent=1 // pred_check_branch
      %1433 = sbr.rel (0) target = $region53
    $region52: #{tpu_custom_call.1} parent=1 // pred_region
      %1434 = dma.done [#allocation4], 128
    $region53: #{tpu_custom_call.1} parent=1 // pred_fallthru
      _
    %1435 = vsyncpa [#allocation3], 1
    %1436 = vsyncpa [#allocation6], 1
    %1437 = vsyncpa [#allocation9], 1
    %1438 = vsyncpa [#allocation4], 1

</llo_original>
